<compile_context>
chip_gen: v7x
topology: tpu7x:2x2x1
jax: 0.10.0
libtpu: 0.0.40
codegen_flags: <defaults>
</compile_context>

<pallas_src>
import functools

import jax
import jax.numpy as jnp
from jax.experimental import pallas as pl
from jax.experimental.pallas import tpu as pltpu


# ----------------------------- in-kernel helpers ----------------------------

def _silu(y):
    # y * sigmoid(y), using EUP exp + approx reciprocal (+ 1 Newton step).
    e = jnp.exp(jnp.minimum(-y, 80.0))        # clamp: no inf even for y << 0
    a = 1.0 + e
    r = pl.reciprocal(a, approx=True)         # EUP slot
    r = r * (2.0 - a * r)                     # Newton refinement (2 cheap VPU ops)
    return y * r


def _dw5x5(v, wd, scale, bias, *, act, H, W):
    """Depthwise 5x5 conv (stride 1, pad 2) + folded BN (+ SiLU), vectorized
    over channels, on a lane-dense (C, H*W) slab of one batch element.

    Vertical out-of-bounds taps read an in-VMEM zero halo; horizontal
    out-of-bounds taps are masked with a per-dx column-validity mask.
    """
    C, HW = v.shape
    P = 2 * W + 2                                            # max |flat shift|
    zpad = jnp.zeros((C, P), jnp.float32)
    vp = jnp.concatenate([zpad, v, zpad], axis=1)            # (C, HW + 2P) in VMEM

    col = jax.lax.broadcasted_iota(jnp.int32, (C, HW), 1) % W
    col_ok = {dx: jnp.logical_and(col + dx >= 0, col + dx < W)
              for dx in (-2, -1, 1, 2)}

    acc = None
    for t in range(25):
        dy, dx = t // 5 - 2, t % 5 - 2
        d = dy * W + dx
        shifted = vp[:, P + d: P + d + HW]                   # static lane slice
        if dx != 0:
            shifted = jnp.where(col_ok[dx], shifted, 0.0)
        tap = wd[:, t:t + 1] * shifted                       # (C,1)*(C,HW)
        acc = tap if acc is None else acc + tap              # first tap inits acc

    y = acc * scale + bias                                   # folded BatchNorm
    return _silu(y) if act else y


# ------------------------------ fused kernel --------------------------------

def _ghost_bottleneck_kernel(x_ref,
                             w1_ref, wd1_ref, s1_ref, b1_ref, s2_ref, b2_ref,
                             w2_ref, wd2_ref, s3_ref, b3_ref, s4_ref, b4_ref,
                             o_ref, *, H, W, matmul_dtype):
    x = x_ref[...]                                           # (C1, H*W) f32

    # GhostConv #1: primary 1x1 conv (MXU, bf16 in / f32 acc) + BN + SiLU
    y1 = jnp.dot(w1_ref[...], x.astype(matmul_dtype),
                 preferred_element_type=jnp.float32)
    y1 = _silu(y1 * s1_ref[...] + b1_ref[...])

    # GhostConv #1: cheap op = depthwise 5x5 + BN + SiLU
    y2 = _dw5x5(y1, wd1_ref[...], s2_ref[...], b2_ref[...], act=True, H=H, W=W)

    out1 = jnp.concatenate([y1, y2], axis=0)                 # (c_, H*W), in VMEM

    # (s == 1) -> nn.Identity() between the two GhostConvs

    # GhostConv #2: primary 1x1 conv + BN (act=False)
    z1 = jnp.dot(w2_ref[...], out1.astype(matmul_dtype),
                 preferred_element_type=jnp.float32)
    z1 = z1 * s3_ref[...] + b3_ref[...]

    # GhostConv #2: cheap op = depthwise 5x5 + BN (act=False)
    z2 = _dw5x5(z1, wd2_ref[...], s4_ref[...], b4_ref[...], act=False, H=H, W=W)

    # concat + Identity shortcut residual add, single lane-dense (C2, H*W) store
    o_ref[...] = jnp.concatenate([z1, z2], axis=0) + x


# -------------------------------- wrapper ------------------------------------

def ghost_bottleneck(x, p, *, matmul_dtype=jnp.bfloat16):
    """GhostBottleneck(c1, c2, k=3, s=1) forward (s=1 => Identity trunk DW and
    Identity shortcut; requires c1 == c2, exactly like the PyTorch module)."""
    N, C1, H, W = x.shape
    cg1 = p['w1'].shape[0]
    c_ = p['w2'].shape[0]
    C2 = 2 * c_
    assert C1 == C2, "s=1 GhostBottleneck residual requires c1 == c2"
    HW = H * W

    x2 = x.reshape(N, C1, HW)                                # contiguous reshape

    kernel = functools.partial(_ghost_bottleneck_kernel,
                               H=H, W=W, matmul_dtype=matmul_dtype)

    const = lambda n: (0, 0)
    out = pl.pallas_call(
        kernel,
        grid=(N,),
        in_specs=[
            pl.BlockSpec((None, C1, HW), lambda n: (n, 0, 0)),   # x slab
            pl.BlockSpec((cg1, C1), const),                      # w1  (bf16)
            pl.BlockSpec((cg1, 25), const),                      # wd1
            pl.BlockSpec((cg1, 1), const),                       # s1
            pl.BlockSpec((cg1, 1), const),                       # b1
            pl.BlockSpec((cg1, 1), const),                       # s2
            pl.BlockSpec((cg1, 1), const),                       # b2
            pl.BlockSpec((c_, c_), const),                       # w2  (bf16)
            pl.BlockSpec((c_, 25), const),                       # wd2
            pl.BlockSpec((c_, 1), const),                        # s3
            pl.BlockSpec((c_, 1), const),                        # b3
            pl.BlockSpec((c_, 1), const),                        # s4
            pl.BlockSpec((c_, 1), const),                        # b4
        ],
        out_specs=pl.BlockSpec((None, C2, HW), lambda n: (n, 0, 0)),
        out_shape=jax.ShapeDtypeStruct((N, C2, HW), jnp.float32),
        compiler_params=pltpu.CompilerParams(
            dimension_semantics=("parallel",)),                  # v7x: 2 TCs
    )(x2,
      p['w1'].astype(matmul_dtype), p['wd1'].reshape(cg1, 25),
      p['s1'].reshape(cg1, 1), p['b1'].reshape(cg1, 1),
      p['s2'].reshape(cg1, 1), p['b2'].reshape(cg1, 1),
      p['w2'].astype(matmul_dtype), p['wd2'].reshape(c_, 25),
      p['s3'].reshape(c_, 1), p['b3'].reshape(c_, 1),
      p['s4'].reshape(c_, 1), p['b4'].reshape(c_, 1))
    return out.reshape(N, C2, H, W)


# --------------------------- parameter setup --------------------------------

def _fold_bn(gamma, beta, mean, var, eps=1e-5):
    scale = gamma * jax.lax.rsqrt(var + eps)
    bias = beta - mean * scale
    return scale, bias


def init_params(key, c1, c2):
    c_ = c2 // 2          # GhostBottleneck hidden channels
    cg1 = c_ // 2         # GhostConv #1 primary channels
    keys = jax.random.split(key, 8)

    def bn(kk, c):
        k1, k2, k3, k4 = jax.random.split(kk, 4)
        gamma = jax.random.uniform(k1, (c,), minval=0.5, maxval=1.5)
        beta = jax.random.normal(k2, (c,)) * 0.1
        mean = jax.random.normal(k3, (c,)) * 0.1
        var = jax.random.uniform(k4, (c,), minval=0.5, maxval=1.5)
        return _fold_bn(gamma, beta, mean, var)

    p = {}
    # GhostConv #1: cv1 = Conv(c1, cg1, 1, 1), cv2 = Conv(cg1, cg1, 5, 1, g=cg1)
    p['w1'] = jax.random.normal(keys[0], (cg1, c1)) * 0.3
    p['s1'], p['b1'] = bn(keys[1], cg1)
    p['wd1'] = jax.random.normal(keys[2], (cg1, 5, 5)) * 0.1
    p['s2'], p['b2'] = bn(keys[3], cg1)
    # GhostConv #2: cv1 = Conv(c_, c_, 1, 1), cv2 = Conv(c_, c_, 5, 1, g=c_)
    p['w2'] = jax.random.normal(keys[4], (c_, c_)) * 0.3
    p['s3'], p['b3'] = bn(keys[5], c_)
    p['wd2'] = jax.random.normal(keys[6], (c_, 5, 5)) * 0.1
    p['s4'], p['b4'] = bn(keys[7], c_)
    return p


# --------------------------- pure-JAX reference ------------------------------

def _ref_pw(x, w, s, b, act, matmul_dtype):
    y = jnp.einsum('oc,nchw->nohw', w.astype(matmul_dtype), x.astype(matmul_dtype),
                   preferred_element_type=jnp.float32)
    y = y * s[None, :, None, None] + b[None, :, None, None]
    return y * jax.nn.sigmoid(y) if act else y


def _ref_dw(x, wd, s, b, act):
    C = x.shape[1]
    y = jax.lax.conv_general_dilated(
        x, wd.reshape(C, 1, 5, 5), (1, 1), ((2, 2), (2, 2)),
        feature_group_count=C, dimension_numbers=('NCHW', 'OIHW', 'NCHW'))
    y = y * s[None, :, None, None] + b[None, :, None, None]
    return y * jax.nn.sigmoid(y) if act else y


def ghost_bottleneck_ref(x, p, *, matmul_dtype=jnp.bfloat16):
    y1 = _ref_pw(x, p['w1'], p['s1'], p['b1'], True, matmul_dtype)
    y2 = _ref_dw(y1, p['wd1'], p['s2'], p['b2'], True)
    out1 = jnp.concatenate([y1, y2], axis=1)
    z1 = _ref_pw(out1, p['w2'], p['s3'], p['b3'], False, matmul_dtype)
    z2 = _ref_dw(z1, p['wd2'], p['s4'], p['b4'], False)
    return jnp.concatenate([z1, z2], axis=1) + x


# --------------------------------- main --------------------------------------

if __name__ == "__main__":
    key = jax.random.PRNGKey(0)
    kx, kp = jax.random.split(key)

    # s=1 path requires c1 == c2 (Identity shortcut add), same as PyTorch.
    N, c1, c2, H, W = 2, 8, 8, 16, 16
    x = jax.random.normal(kx, (N, c1, H, W), dtype=jnp.float32)
    params = init_params(kp, c1, c2)

    out = jax.block_until_ready(ghost_bottleneck(x, params))
    ref = jax.block_until_ready(ghost_bottleneck_ref(x, params))

    assert out.shape == (N, c2, H, W) and out.dtype == jnp.float32
    err = float(jnp.max(jnp.abs(out - ref)))
    if not bool(jnp.isfinite(out).all()) or err > 1e-2:
        raise SystemExit(f"mismatch vs reference: max abs err = {err}")

    print("KERNEL_OK")
</pallas_src>

<mosaic_0001>
module attributes {stable_mosaic.version = 11 : i64} {
  func.func @_ghost_bottleneck_kernel(%arg0: i32, %arg1: memref<1x8x256xf32, #tpu.memory_space<vmem>>, %arg2: memref<2x8xbf16, #tpu.memory_space<vmem>>, %arg3: memref<2x25xf32, #tpu.memory_space<vmem>>, %arg4: memref<2x1xf32, #tpu.memory_space<vmem>>, %arg5: memref<2x1xf32, #tpu.memory_space<vmem>>, %arg6: memref<2x1xf32, #tpu.memory_space<vmem>>, %arg7: memref<2x1xf32, #tpu.memory_space<vmem>>, %arg8: memref<4x4xbf16, #tpu.memory_space<vmem>>, %arg9: memref<4x25xf32, #tpu.memory_space<vmem>>, %arg10: memref<4x1xf32, #tpu.memory_space<vmem>>, %arg11: memref<4x1xf32, #tpu.memory_space<vmem>>, %arg12: memref<4x1xf32, #tpu.memory_space<vmem>>, %arg13: memref<4x1xf32, #tpu.memory_space<vmem>>, %arg14: memref<1x8x256xf32, #tpu.memory_space<vmem>>) attributes {dimension_semantics = [#tpu.dimension_semantics<parallel>], iteration_bounds = array<i64: 2>, scalar_prefetch = 0 : i64, scratch_operands = 0 : i64, tpu.core_type = #tpu.core_type<tc>, window_params = [{transform_indices = @transform_0, window_bounds = array<i64: 1, 8, 256>}, {pipeline_mode = #tpu.pipeline_mode<synchronous>, transform_indices = @transform_1, window_bounds = array<i64: 2, 8>}, {pipeline_mode = #tpu.pipeline_mode<synchronous>, transform_indices = @transform_2, window_bounds = array<i64: 2, 25>}, {pipeline_mode = #tpu.pipeline_mode<synchronous>, transform_indices = @transform_3, window_bounds = array<i64: 2, 1>}, {pipeline_mode = #tpu.pipeline_mode<synchronous>, transform_indices = @transform_4, window_bounds = array<i64: 2, 1>}, {pipeline_mode = #tpu.pipeline_mode<synchronous>, transform_indices = @transform_5, window_bounds = array<i64: 2, 1>}, {pipeline_mode = #tpu.pipeline_mode<synchronous>, transform_indices = @transform_6, window_bounds = array<i64: 2, 1>}, {pipeline_mode = #tpu.pipeline_mode<synchronous>, transform_indices = @transform_7, window_bounds = array<i64: 4, 4>}, {pipeline_mode = #tpu.pipeline_mode<synchronous>, transform_indices = @transform_8, window_bounds = array<i64: 4, 25>}, {pipeline_mode = #tpu.pipeline_mode<synchronous>, transform_indices = @transform_9, window_bounds = array<i64: 4, 1>}, {pipeline_mode = #tpu.pipeline_mode<synchronous>, transform_indices = @transform_10, window_bounds = array<i64: 4, 1>}, {pipeline_mode = #tpu.pipeline_mode<synchronous>, transform_indices = @transform_11, window_bounds = array<i64: 4, 1>}, {pipeline_mode = #tpu.pipeline_mode<synchronous>, transform_indices = @transform_12, window_bounds = array<i64: 4, 1>}, {transform_indices = @transform_13, window_bounds = array<i64: 1, 8, 256>}]} {
    %c0 = arith.constant 0 : index
    %c0_0 = arith.constant 0 : index
    %c0_1 = arith.constant 0 : index
    %0 = vector.load %arg1[%c0, %c0_0, %c0_1] : memref<1x8x256xf32, #tpu.memory_space<vmem>>, vector<1x8x256xf32>
    %1 = vector.shape_cast %0 : vector<1x8x256xf32> to vector<8x256xf32>
    %c0_2 = arith.constant 0 : index
    %c0_3 = arith.constant 0 : index
    %2 = vector.load %arg2[%c0_2, %c0_3] : memref<2x8xbf16, #tpu.memory_space<vmem>>, vector<2x8xbf16>
    %3 = arith.truncf %1 : vector<8x256xf32> to vector<8x256xbf16>
    %cst = arith.constant dense<0.000000e+00> : vector<2x256xf32>
    %4 = tpu.matmul %2, %3, %cst {dimension_numbers = #tpu.dot_dimension_numbers<[1], [0], [0], [1], [0, 0, 1, 1], [], []>} : vector<2x8xbf16>, vector<8x256xbf16>, vector<2x256xf32> -> vector<2x256xf32>
    %c0_4 = arith.constant 0 : index
    %c0_5 = arith.constant 0 : index
    %5 = vector.load %arg4[%c0_4, %c0_5] : memref<2x1xf32, #tpu.memory_space<vmem>>, vector<2x1xf32>
    %6 = vector.broadcast %5 : vector<2x1xf32> to vector<2x256xf32>
    %7 = arith.mulf %4, %6 : vector<2x256xf32>
    %c0_6 = arith.constant 0 : index
    %c0_7 = arith.constant 0 : index
    %8 = vector.load %arg5[%c0_6, %c0_7] : memref<2x1xf32, #tpu.memory_space<vmem>>, vector<2x1xf32>
    %9 = vector.broadcast %8 : vector<2x1xf32> to vector<2x256xf32>
    %10 = arith.addf %7, %9 : vector<2x256xf32>
    %cst_8 = arith.constant 0.000000e+00 : f32
    %11 = vector.broadcast %cst_8 : f32 to vector<2x256xf32>
    %12 = arith.subf %11, %10 : vector<2x256xf32>
    %cst_9 = arith.constant 8.000000e+01 : f32
    %13 = vector.broadcast %cst_9 : f32 to vector<2x256xf32>
    %14 = arith.minimumf %12, %13 : vector<2x256xf32>
    %15 = math.exp %14 : vector<2x256xf32>
    %cst_10 = arith.constant 1.000000e+00 : f32
    %16 = vector.broadcast %cst_10 : f32 to vector<2x256xf32>
    %17 = arith.addf %16, %15 : vector<2x256xf32>
    %18 = tpu.reciprocal %17 {approx = true} : vector<2x256xf32> -> vector<2x256xf32>
    %19 = arith.mulf %17, %18 : vector<2x256xf32>
    %cst_11 = arith.constant 2.000000e+00 : f32
    %20 = vector.broadcast %cst_11 : f32 to vector<2x256xf32>
    %21 = arith.subf %20, %19 : vector<2x256xf32>
    %22 = arith.mulf %18, %21 : vector<2x256xf32>
    %23 = arith.mulf %10, %22 : vector<2x256xf32>
    %c0_12 = arith.constant 0 : index
    %c0_13 = arith.constant 0 : index
    %24 = vector.load %arg3[%c0_12, %c0_13] : memref<2x25xf32, #tpu.memory_space<vmem>>, vector<2x25xf32>
    %c0_14 = arith.constant 0 : index
    %c0_15 = arith.constant 0 : index
    %25 = vector.load %arg6[%c0_14, %c0_15] : memref<2x1xf32, #tpu.memory_space<vmem>>, vector<2x1xf32>
    %c0_16 = arith.constant 0 : index
    %c0_17 = arith.constant 0 : index
    %26 = vector.load %arg7[%c0_16, %c0_17] : memref<2x1xf32, #tpu.memory_space<vmem>>, vector<2x1xf32>
    %cst_18 = arith.constant 0.000000e+00 : f32
    %27 = vector.broadcast %cst_18 : f32 to vector<2x34xf32>
    %28 = tpu.concatenate %27, %23, %27 in 1 : vector<2x34xf32>, vector<2x256xf32>, vector<2x34xf32> -> vector<2x324xf32>
    %29 = tpu.iota {dimensions = array<i32: 1>} : vector<2x256xi32>
    %c16_i32 = arith.constant 16 : i32
    %c0_i32 = arith.constant 0 : i32
    %30 = arith.cmpi eq, %c16_i32, %c0_i32 : i32
    %c1_i32 = arith.constant 1 : i32
    %31 = arith.select %30, %c1_i32, %c16_i32 : i32
    %32 = vector.broadcast %31 : i32 to vector<2x256xi32>
    %33 = arith.remsi %29, %32 : vector<2x256xi32>
    %c0_i32_19 = arith.constant 0 : i32
    %34 = vector.broadcast %c0_i32_19 : i32 to vector<2x256xi32>
    %35 = arith.cmpi ne, %33, %34 : vector<2x256xi32>
    %c0_i32_20 = arith.constant 0 : i32
    %36 = vector.broadcast %c0_i32_20 : i32 to vector<2x256xi32>
    %37 = arith.cmpi slt, %33, %36 : vector<2x256xi32>
    %c0_i32_21 = arith.constant 0 : i32
    %38 = arith.cmpi slt, %31, %c0_i32_21 : i32
    %39 = vector.broadcast %38 : i1 to vector<2x256xi1>
    %40 = vector.broadcast %39 : vector<2x256xi1> to vector<2x256xi1>
    %41 = arith.xori %37, %40 : vector<2x256xi1>
    %42 = arith.andi %41, %35 : vector<2x256xi1>
    %43 = vector.broadcast %31 : i32 to vector<2x256xi32>
    %44 = arith.addi %33, %43 : vector<2x256xi32>
    %45 = arith.select %42, %44, %33 : vector<2x256xi1>, vector<2x256xi32>
    %c-2_i32 = arith.constant -2 : i32
    %46 = vector.broadcast %c-2_i32 : i32 to vector<2x256xi32>
    %47 = arith.addi %45, %46 : vector<2x256xi32>
    %c0_i32_22 = arith.constant 0 : i32
    %48 = vector.broadcast %c0_i32_22 : i32 to vector<2x256xi32>
    %49 = arith.cmpi sge, %47, %48 : vector<2x256xi32>
    %c-2_i32_23 = arith.constant -2 : i32
    %50 = vector.broadcast %c-2_i32_23 : i32 to vector<2x256xi32>
    %51 = arith.addi %45, %50 : vector<2x256xi32>
    %c16_i32_24 = arith.constant 16 : i32
    %52 = vector.broadcast %c16_i32_24 : i32 to vector<2x256xi32>
    %53 = arith.cmpi slt, %51, %52 : vector<2x256xi32>
    %54 = arith.andi %49, %53 : vector<2x256xi1>
    %c-1_i32 = arith.constant -1 : i32
    %55 = vector.broadcast %c-1_i32 : i32 to vector<2x256xi32>
    %56 = arith.addi %45, %55 : vector<2x256xi32>
    %c0_i32_25 = arith.constant 0 : i32
    %57 = vector.broadcast %c0_i32_25 : i32 to vector<2x256xi32>
    %58 = arith.cmpi sge, %56, %57 : vector<2x256xi32>
    %c-1_i32_26 = arith.constant -1 : i32
    %59 = vector.broadcast %c-1_i32_26 : i32 to vector<2x256xi32>
    %60 = arith.addi %45, %59 : vector<2x256xi32>
    %c16_i32_27 = arith.constant 16 : i32
    %61 = vector.broadcast %c16_i32_27 : i32 to vector<2x256xi32>
    %62 = arith.cmpi slt, %60, %61 : vector<2x256xi32>
    %63 = arith.andi %58, %62 : vector<2x256xi1>
    %c1_i32_28 = arith.constant 1 : i32
    %64 = vector.broadcast %c1_i32_28 : i32 to vector<2x256xi32>
    %65 = arith.addi %45, %64 : vector<2x256xi32>
    %c0_i32_29 = arith.constant 0 : i32
    %66 = vector.broadcast %c0_i32_29 : i32 to vector<2x256xi32>
    %67 = arith.cmpi sge, %65, %66 : vector<2x256xi32>
    %c1_i32_30 = arith.constant 1 : i32
    %68 = vector.broadcast %c1_i32_30 : i32 to vector<2x256xi32>
    %69 = arith.addi %45, %68 : vector<2x256xi32>
    %c16_i32_31 = arith.constant 16 : i32
    %70 = vector.broadcast %c16_i32_31 : i32 to vector<2x256xi32>
    %71 = arith.cmpi slt, %69, %70 : vector<2x256xi32>
    %72 = arith.andi %67, %71 : vector<2x256xi1>
    %c2_i32 = arith.constant 2 : i32
    %73 = vector.broadcast %c2_i32 : i32 to vector<2x256xi32>
    %74 = arith.addi %45, %73 : vector<2x256xi32>
    %c0_i32_32 = arith.constant 0 : i32
    %75 = vector.broadcast %c0_i32_32 : i32 to vector<2x256xi32>
    %76 = arith.cmpi sge, %74, %75 : vector<2x256xi32>
    %c2_i32_33 = arith.constant 2 : i32
    %77 = vector.broadcast %c2_i32_33 : i32 to vector<2x256xi32>
    %78 = arith.addi %45, %77 : vector<2x256xi32>
    %c16_i32_34 = arith.constant 16 : i32
    %79 = vector.broadcast %c16_i32_34 : i32 to vector<2x256xi32>
    %80 = arith.cmpi slt, %78, %79 : vector<2x256xi32>
    %81 = arith.andi %76, %80 : vector<2x256xi1>
    %82 = vector.extract_strided_slice %28 {offsets = [0, 0], sizes = [2, 256], strides = [1, 1]} : vector<2x324xf32> to vector<2x256xf32>
    %cst_35 = arith.constant 0.000000e+00 : f32
    %83 = vector.broadcast %cst_35 : f32 to vector<2x256xf32>
    %84 = arith.select %54, %82, %83 : vector<2x256xi1>, vector<2x256xf32>
    %85 = vector.extract_strided_slice %24 {offsets = [0, 0], sizes = [2, 1], strides = [1, 1]} : vector<2x25xf32> to vector<2x1xf32>
    %86 = vector.broadcast %85 : vector<2x1xf32> to vector<2x256xf32>
    %87 = arith.mulf %86, %84 : vector<2x256xf32>
    %88 = vector.extract_strided_slice %28 {offsets = [0, 1], sizes = [2, 256], strides = [1, 1]} : vector<2x324xf32> to vector<2x256xf32>
    %cst_36 = arith.constant 0.000000e+00 : f32
    %89 = vector.broadcast %cst_36 : f32 to vector<2x256xf32>
    %90 = arith.select %63, %88, %89 : vector<2x256xi1>, vector<2x256xf32>
    %91 = vector.extract_strided_slice %24 {offsets = [0, 1], sizes = [2, 1], strides = [1, 1]} : vector<2x25xf32> to vector<2x1xf32>
    %92 = vector.broadcast %91 : vector<2x1xf32> to vector<2x256xf32>
    %93 = arith.mulf %92, %90 : vector<2x256xf32>
    %94 = arith.addf %87, %93 : vector<2x256xf32>
    %95 = vector.extract_strided_slice %28 {offsets = [0, 2], sizes = [2, 256], strides = [1, 1]} : vector<2x324xf32> to vector<2x256xf32>
    %96 = vector.extract_strided_slice %24 {offsets = [0, 2], sizes = [2, 1], strides = [1, 1]} : vector<2x25xf32> to vector<2x1xf32>
    %97 = vector.broadcast %96 : vector<2x1xf32> to vector<2x256xf32>
    %98 = arith.mulf %97, %95 : vector<2x256xf32>
    %99 = arith.addf %94, %98 : vector<2x256xf32>
    %100 = vector.extract_strided_slice %28 {offsets = [0, 3], sizes = [2, 256], strides = [1, 1]} : vector<2x324xf32> to vector<2x256xf32>
    %cst_37 = arith.constant 0.000000e+00 : f32
    %101 = vector.broadcast %cst_37 : f32 to vector<2x256xf32>
    %102 = arith.select %72, %100, %101 : vector<2x256xi1>, vector<2x256xf32>
    %103 = vector.extract_strided_slice %24 {offsets = [0, 3], sizes = [2, 1], strides = [1, 1]} : vector<2x25xf32> to vector<2x1xf32>
    %104 = vector.broadcast %103 : vector<2x1xf32> to vector<2x256xf32>
    %105 = arith.mulf %104, %102 : vector<2x256xf32>
    %106 = arith.addf %99, %105 : vector<2x256xf32>
    %107 = vector.extract_strided_slice %28 {offsets = [0, 4], sizes = [2, 256], strides = [1, 1]} : vector<2x324xf32> to vector<2x256xf32>
    %cst_38 = arith.constant 0.000000e+00 : f32
    %108 = vector.broadcast %cst_38 : f32 to vector<2x256xf32>
    %109 = arith.select %81, %107, %108 : vector<2x256xi1>, vector<2x256xf32>
    %110 = vector.extract_strided_slice %24 {offsets = [0, 4], sizes = [2, 1], strides = [1, 1]} : vector<2x25xf32> to vector<2x1xf32>
    %111 = vector.broadcast %110 : vector<2x1xf32> to vector<2x256xf32>
    %112 = arith.mulf %111, %109 : vector<2x256xf32>
    %113 = arith.addf %106, %112 : vector<2x256xf32>
    %114 = vector.extract_strided_slice %28 {offsets = [0, 16], sizes = [2, 256], strides = [1, 1]} : vector<2x324xf32> to vector<2x256xf32>
    %cst_39 = arith.constant 0.000000e+00 : f32
    %115 = vector.broadcast %cst_39 : f32 to vector<2x256xf32>
    %116 = arith.select %54, %114, %115 : vector<2x256xi1>, vector<2x256xf32>
    %117 = vector.extract_strided_slice %24 {offsets = [0, 5], sizes = [2, 1], strides = [1, 1]} : vector<2x25xf32> to vector<2x1xf32>
    %118 = vector.broadcast %117 : vector<2x1xf32> to vector<2x256xf32>
    %119 = arith.mulf %118, %116 : vector<2x256xf32>
    %120 = arith.addf %113, %119 : vector<2x256xf32>
    %121 = vector.extract_strided_slice %28 {offsets = [0, 17], sizes = [2, 256], strides = [1, 1]} : vector<2x324xf32> to vector<2x256xf32>
    %cst_40 = arith.constant 0.000000e+00 : f32
    %122 = vector.broadcast %cst_40 : f32 to vector<2x256xf32>
    %123 = arith.select %63, %121, %122 : vector<2x256xi1>, vector<2x256xf32>
    %124 = vector.extract_strided_slice %24 {offsets = [0, 6], sizes = [2, 1], strides = [1, 1]} : vector<2x25xf32> to vector<2x1xf32>
    %125 = vector.broadcast %124 : vector<2x1xf32> to vector<2x256xf32>
    %126 = arith.mulf %125, %123 : vector<2x256xf32>
    %127 = arith.addf %120, %126 : vector<2x256xf32>
    %128 = vector.extract_strided_slice %28 {offsets = [0, 18], sizes = [2, 256], strides = [1, 1]} : vector<2x324xf32> to vector<2x256xf32>
    %129 = vector.extract_strided_slice %24 {offsets = [0, 7], sizes = [2, 1], strides = [1, 1]} : vector<2x25xf32> to vector<2x1xf32>
    %130 = vector.broadcast %129 : vector<2x1xf32> to vector<2x256xf32>
    %131 = arith.mulf %130, %128 : vector<2x256xf32>
    %132 = arith.addf %127, %131 : vector<2x256xf32>
    %133 = vector.extract_strided_slice %28 {offsets = [0, 19], sizes = [2, 256], strides = [1, 1]} : vector<2x324xf32> to vector<2x256xf32>
    %cst_41 = arith.constant 0.000000e+00 : f32
    %134 = vector.broadcast %cst_41 : f32 to vector<2x256xf32>
    %135 = arith.select %72, %133, %134 : vector<2x256xi1>, vector<2x256xf32>
    %136 = vector.extract_strided_slice %24 {offsets = [0, 8], sizes = [2, 1], strides = [1, 1]} : vector<2x25xf32> to vector<2x1xf32>
    %137 = vector.broadcast %136 : vector<2x1xf32> to vector<2x256xf32>
    %138 = arith.mulf %137, %135 : vector<2x256xf32>
    %139 = arith.addf %132, %138 : vector<2x256xf32>
    %140 = vector.extract_strided_slice %28 {offsets = [0, 20], sizes = [2, 256], strides = [1, 1]} : vector<2x324xf32> to vector<2x256xf32>
    %cst_42 = arith.constant 0.000000e+00 : f32
    %141 = vector.broadcast %cst_42 : f32 to vector<2x256xf32>
    %142 = arith.select %81, %140, %141 : vector<2x256xi1>, vector<2x256xf32>
    %143 = vector.extract_strided_slice %24 {offsets = [0, 9], sizes = [2, 1], strides = [1, 1]} : vector<2x25xf32> to vector<2x1xf32>
    %144 = vector.broadcast %143 : vector<2x1xf32> to vector<2x256xf32>
    %145 = arith.mulf %144, %142 : vector<2x256xf32>
    %146 = arith.addf %139, %145 : vector<2x256xf32>
    %147 = vector.extract_strided_slice %28 {offsets = [0, 32], sizes = [2, 256], strides = [1, 1]} : vector<2x324xf32> to vector<2x256xf32>
    %cst_43 = arith.constant 0.000000e+00 : f32
    %148 = vector.broadcast %cst_43 : f32 to vector<2x256xf32>
    %149 = arith.select %54, %147, %148 : vector<2x256xi1>, vector<2x256xf32>
    %150 = vector.extract_strided_slice %24 {offsets = [0, 10], sizes = [2, 1], strides = [1, 1]} : vector<2x25xf32> to vector<2x1xf32>
    %151 = vector.broadcast %150 : vector<2x1xf32> to vector<2x256xf32>
    %152 = arith.mulf %151, %149 : vector<2x256xf32>
    %153 = arith.addf %146, %152 : vector<2x256xf32>
    %154 = vector.extract_strided_slice %28 {offsets = [0, 33], sizes = [2, 256], strides = [1, 1]} : vector<2x324xf32> to vector<2x256xf32>
    %cst_44 = arith.constant 0.000000e+00 : f32
    %155 = vector.broadcast %cst_44 : f32 to vector<2x256xf32>
    %156 = arith.select %63, %154, %155 : vector<2x256xi1>, vector<2x256xf32>
    %157 = vector.extract_strided_slice %24 {offsets = [0, 11], sizes = [2, 1], strides = [1, 1]} : vector<2x25xf32> to vector<2x1xf32>
    %158 = vector.broadcast %157 : vector<2x1xf32> to vector<2x256xf32>
    %159 = arith.mulf %158, %156 : vector<2x256xf32>
    %160 = arith.addf %153, %159 : vector<2x256xf32>
    %161 = vector.extract_strided_slice %28 {offsets = [0, 34], sizes = [2, 256], strides = [1, 1]} : vector<2x324xf32> to vector<2x256xf32>
    %162 = vector.extract_strided_slice %24 {offsets = [0, 12], sizes = [2, 1], strides = [1, 1]} : vector<2x25xf32> to vector<2x1xf32>
    %163 = vector.broadcast %162 : vector<2x1xf32> to vector<2x256xf32>
    %164 = arith.mulf %163, %161 : vector<2x256xf32>
    %165 = arith.addf %160, %164 : vector<2x256xf32>
    %166 = vector.extract_strided_slice %28 {offsets = [0, 35], sizes = [2, 256], strides = [1, 1]} : vector<2x324xf32> to vector<2x256xf32>
    %cst_45 = arith.constant 0.000000e+00 : f32
    %167 = vector.broadcast %cst_45 : f32 to vector<2x256xf32>
    %168 = arith.select %72, %166, %167 : vector<2x256xi1>, vector<2x256xf32>
    %169 = vector.extract_strided_slice %24 {offsets = [0, 13], sizes = [2, 1], strides = [1, 1]} : vector<2x25xf32> to vector<2x1xf32>
    %170 = vector.broadcast %169 : vector<2x1xf32> to vector<2x256xf32>
    %171 = arith.mulf %170, %168 : vector<2x256xf32>
    %172 = arith.addf %165, %171 : vector<2x256xf32>
    %173 = vector.extract_strided_slice %28 {offsets = [0, 36], sizes = [2, 256], strides = [1, 1]} : vector<2x324xf32> to vector<2x256xf32>
    %cst_46 = arith.constant 0.000000e+00 : f32
    %174 = vector.broadcast %cst_46 : f32 to vector<2x256xf32>
    %175 = arith.select %81, %173, %174 : vector<2x256xi1>, vector<2x256xf32>
    %176 = vector.extract_strided_slice %24 {offsets = [0, 14], sizes = [2, 1], strides = [1, 1]} : vector<2x25xf32> to vector<2x1xf32>
    %177 = vector.broadcast %176 : vector<2x1xf32> to vector<2x256xf32>
    %178 = arith.mulf %177, %175 : vector<2x256xf32>
    %179 = arith.addf %172, %178 : vector<2x256xf32>
    %180 = vector.extract_strided_slice %28 {offsets = [0, 48], sizes = [2, 256], strides = [1, 1]} : vector<2x324xf32> to vector<2x256xf32>
    %cst_47 = arith.constant 0.000000e+00 : f32
    %181 = vector.broadcast %cst_47 : f32 to vector<2x256xf32>
    %182 = arith.select %54, %180, %181 : vector<2x256xi1>, vector<2x256xf32>
    %183 = vector.extract_strided_slice %24 {offsets = [0, 15], sizes = [2, 1], strides = [1, 1]} : vector<2x25xf32> to vector<2x1xf32>
    %184 = vector.broadcast %183 : vector<2x1xf32> to vector<2x256xf32>
    %185 = arith.mulf %184, %182 : vector<2x256xf32>
    %186 = arith.addf %179, %185 : vector<2x256xf32>
    %187 = vector.extract_strided_slice %28 {offsets = [0, 49], sizes = [2, 256], strides = [1, 1]} : vector<2x324xf32> to vector<2x256xf32>
    %cst_48 = arith.constant 0.000000e+00 : f32
    %188 = vector.broadcast %cst_48 : f32 to vector<2x256xf32>
    %189 = arith.select %63, %187, %188 : vector<2x256xi1>, vector<2x256xf32>
    %190 = vector.extract_strided_slice %24 {offsets = [0, 16], sizes = [2, 1], strides = [1, 1]} : vector<2x25xf32> to vector<2x1xf32>
    %191 = vector.broadcast %190 : vector<2x1xf32> to vector<2x256xf32>
    %192 = arith.mulf %191, %189 : vector<2x256xf32>
    %193 = arith.addf %186, %192 : vector<2x256xf32>
    %194 = vector.extract_strided_slice %28 {offsets = [0, 50], sizes = [2, 256], strides = [1, 1]} : vector<2x324xf32> to vector<2x256xf32>
    %195 = vector.extract_strided_slice %24 {offsets = [0, 17], sizes = [2, 1], strides = [1, 1]} : vector<2x25xf32> to vector<2x1xf32>
    %196 = vector.broadcast %195 : vector<2x1xf32> to vector<2x256xf32>
    %197 = arith.mulf %196, %194 : vector<2x256xf32>
    %198 = arith.addf %193, %197 : vector<2x256xf32>
    %199 = vector.extract_strided_slice %28 {offsets = [0, 51], sizes = [2, 256], strides = [1, 1]} : vector<2x324xf32> to vector<2x256xf32>
    %cst_49 = arith.constant 0.000000e+00 : f32
    %200 = vector.broadcast %cst_49 : f32 to vector<2x256xf32>
    %201 = arith.select %72, %199, %200 : vector<2x256xi1>, vector<2x256xf32>
    %202 = vector.extract_strided_slice %24 {offsets = [0, 18], sizes = [2, 1], strides = [1, 1]} : vector<2x25xf32> to vector<2x1xf32>
    %203 = vector.broadcast %202 : vector<2x1xf32> to vector<2x256xf32>
    %204 = arith.mulf %203, %201 : vector<2x256xf32>
    %205 = arith.addf %198, %204 : vector<2x256xf32>
    %206 = vector.extract_strided_slice %28 {offsets = [0, 52], sizes = [2, 256], strides = [1, 1]} : vector<2x324xf32> to vector<2x256xf32>
    %cst_50 = arith.constant 0.000000e+00 : f32
    %207 = vector.broadcast %cst_50 : f32 to vector<2x256xf32>
    %208 = arith.select %81, %206, %207 : vector<2x256xi1>, vector<2x256xf32>
    %209 = vector.extract_strided_slice %24 {offsets = [0, 19], sizes = [2, 1], strides = [1, 1]} : vector<2x25xf32> to vector<2x1xf32>
    %210 = vector.broadcast %209 : vector<2x1xf32> to vector<2x256xf32>
    %211 = arith.mulf %210, %208 : vector<2x256xf32>
    %212 = arith.addf %205, %211 : vector<2x256xf32>
    %213 = vector.extract_strided_slice %28 {offsets = [0, 64], sizes = [2, 256], strides = [1, 1]} : vector<2x324xf32> to vector<2x256xf32>
    %cst_51 = arith.constant 0.000000e+00 : f32
    %214 = vector.broadcast %cst_51 : f32 to vector<2x256xf32>
    %215 = arith.select %54, %213, %214 : vector<2x256xi1>, vector<2x256xf32>
    %216 = vector.extract_strided_slice %24 {offsets = [0, 20], sizes = [2, 1], strides = [1, 1]} : vector<2x25xf32> to vector<2x1xf32>
    %217 = vector.broadcast %216 : vector<2x1xf32> to vector<2x256xf32>
    %218 = arith.mulf %217, %215 : vector<2x256xf32>
    %219 = arith.addf %212, %218 : vector<2x256xf32>
    %220 = vector.extract_strided_slice %28 {offsets = [0, 65], sizes = [2, 256], strides = [1, 1]} : vector<2x324xf32> to vector<2x256xf32>
    %cst_52 = arith.constant 0.000000e+00 : f32
    %221 = vector.broadcast %cst_52 : f32 to vector<2x256xf32>
    %222 = arith.select %63, %220, %221 : vector<2x256xi1>, vector<2x256xf32>
    %223 = vector.extract_strided_slice %24 {offsets = [0, 21], sizes = [2, 1], strides = [1, 1]} : vector<2x25xf32> to vector<2x1xf32>
    %224 = vector.broadcast %223 : vector<2x1xf32> to vector<2x256xf32>
    %225 = arith.mulf %224, %222 : vector<2x256xf32>
    %226 = arith.addf %219, %225 : vector<2x256xf32>
    %227 = vector.extract_strided_slice %28 {offsets = [0, 66], sizes = [2, 256], strides = [1, 1]} : vector<2x324xf32> to vector<2x256xf32>
    %228 = vector.extract_strided_slice %24 {offsets = [0, 22], sizes = [2, 1], strides = [1, 1]} : vector<2x25xf32> to vector<2x1xf32>
    %229 = vector.broadcast %228 : vector<2x1xf32> to vector<2x256xf32>
    %230 = arith.mulf %229, %227 : vector<2x256xf32>
    %231 = arith.addf %226, %230 : vector<2x256xf32>
    %232 = vector.extract_strided_slice %28 {offsets = [0, 67], sizes = [2, 256], strides = [1, 1]} : vector<2x324xf32> to vector<2x256xf32>
    %cst_53 = arith.constant 0.000000e+00 : f32
    %233 = vector.broadcast %cst_53 : f32 to vector<2x256xf32>
    %234 = arith.select %72, %232, %233 : vector<2x256xi1>, vector<2x256xf32>
    %235 = vector.extract_strided_slice %24 {offsets = [0, 23], sizes = [2, 1], strides = [1, 1]} : vector<2x25xf32> to vector<2x1xf32>
    %236 = vector.broadcast %235 : vector<2x1xf32> to vector<2x256xf32>
    %237 = arith.mulf %236, %234 : vector<2x256xf32>
    %238 = arith.addf %231, %237 : vector<2x256xf32>
    %239 = vector.extract_strided_slice %28 {offsets = [0, 68], sizes = [2, 256], strides = [1, 1]} : vector<2x324xf32> to vector<2x256xf32>
    %cst_54 = arith.constant 0.000000e+00 : f32
    %240 = vector.broadcast %cst_54 : f32 to vector<2x256xf32>
    %241 = arith.select %81, %239, %240 : vector<2x256xi1>, vector<2x256xf32>
    %242 = vector.extract_strided_slice %24 {offsets = [0, 24], sizes = [2, 1], strides = [1, 1]} : vector<2x25xf32> to vector<2x1xf32>
    %243 = vector.broadcast %242 : vector<2x1xf32> to vector<2x256xf32>
    %244 = arith.mulf %243, %241 : vector<2x256xf32>
    %245 = arith.addf %238, %244 : vector<2x256xf32>
    %246 = vector.broadcast %25 : vector<2x1xf32> to vector<2x256xf32>
    %247 = arith.mulf %245, %246 : vector<2x256xf32>
    %248 = vector.broadcast %26 : vector<2x1xf32> to vector<2x256xf32>
    %249 = arith.addf %247, %248 : vector<2x256xf32>
    %cst_55 = arith.constant 0.000000e+00 : f32
    %250 = vector.broadcast %cst_55 : f32 to vector<2x256xf32>
    %251 = arith.subf %250, %249 : vector<2x256xf32>
    %cst_56 = arith.constant 8.000000e+01 : f32
    %252 = vector.broadcast %cst_56 : f32 to vector<2x256xf32>
    %253 = arith.minimumf %251, %252 : vector<2x256xf32>
    %254 = math.exp %253 : vector<2x256xf32>
    %cst_57 = arith.constant 1.000000e+00 : f32
    %255 = vector.broadcast %cst_57 : f32 to vector<2x256xf32>
    %256 = arith.addf %255, %254 : vector<2x256xf32>
    %257 = tpu.reciprocal %256 {approx = true} : vector<2x256xf32> -> vector<2x256xf32>
    %258 = arith.mulf %256, %257 : vector<2x256xf32>
    %cst_58 = arith.constant 2.000000e+00 : f32
    %259 = vector.broadcast %cst_58 : f32 to vector<2x256xf32>
    %260 = arith.subf %259, %258 : vector<2x256xf32>
    %261 = arith.mulf %257, %260 : vector<2x256xf32>
    %262 = arith.mulf %249, %261 : vector<2x256xf32>
    %263 = tpu.concatenate %23, %262 in 0 : vector<2x256xf32>, vector<2x256xf32> -> vector<4x256xf32>
    %c0_59 = arith.constant 0 : index
    %c0_60 = arith.constant 0 : index
    %264 = vector.load %arg8[%c0_59, %c0_60] : memref<4x4xbf16, #tpu.memory_space<vmem>>, vector<4x4xbf16>
    %265 = arith.truncf %263 : vector<4x256xf32> to vector<4x256xbf16>
    %cst_61 = arith.constant dense<0.000000e+00> : vector<4x256xf32>
    %266 = tpu.matmul %264, %265, %cst_61 {dimension_numbers = #tpu.dot_dimension_numbers<[1], [0], [0], [1], [0, 0, 1, 1], [], []>} : vector<4x4xbf16>, vector<4x256xbf16>, vector<4x256xf32> -> vector<4x256xf32>
    %c0_62 = arith.constant 0 : index
    %c0_63 = arith.constant 0 : index
    %267 = vector.load %arg10[%c0_62, %c0_63] : memref<4x1xf32, #tpu.memory_space<vmem>>, vector<4x1xf32>
    %268 = vector.broadcast %267 : vector<4x1xf32> to vector<4x256xf32>
    %269 = arith.mulf %266, %268 : vector<4x256xf32>
    %c0_64 = arith.constant 0 : index
    %c0_65 = arith.constant 0 : index
    %270 = vector.load %arg11[%c0_64, %c0_65] : memref<4x1xf32, #tpu.memory_space<vmem>>, vector<4x1xf32>
    %271 = vector.broadcast %270 : vector<4x1xf32> to vector<4x256xf32>
    %272 = arith.addf %269, %271 : vector<4x256xf32>
    %c0_66 = arith.constant 0 : index
    %c0_67 = arith.constant 0 : index
    %273 = vector.load %arg9[%c0_66, %c0_67] : memref<4x25xf32, #tpu.memory_space<vmem>>, vector<4x25xf32>
    %c0_68 = arith.constant 0 : index
    %c0_69 = arith.constant 0 : index
    %274 = vector.load %arg12[%c0_68, %c0_69] : memref<4x1xf32, #tpu.memory_space<vmem>>, vector<4x1xf32>
    %c0_70 = arith.constant 0 : index
    %c0_71 = arith.constant 0 : index
    %275 = vector.load %arg13[%c0_70, %c0_71] : memref<4x1xf32, #tpu.memory_space<vmem>>, vector<4x1xf32>
    %cst_72 = arith.constant 0.000000e+00 : f32
    %276 = vector.broadcast %cst_72 : f32 to vector<4x34xf32>
    %277 = tpu.concatenate %276, %272, %276 in 1 : vector<4x34xf32>, vector<4x256xf32>, vector<4x34xf32> -> vector<4x324xf32>
    %278 = tpu.iota {dimensions = array<i32: 1>} : vector<4x256xi32>
    %c16_i32_73 = arith.constant 16 : i32
    %c0_i32_74 = arith.constant 0 : i32
    %279 = arith.cmpi eq, %c16_i32_73, %c0_i32_74 : i32
    %c1_i32_75 = arith.constant 1 : i32
    %280 = arith.select %279, %c1_i32_75, %c16_i32_73 : i32
    %281 = vector.broadcast %280 : i32 to vector<4x256xi32>
    %282 = arith.remsi %278, %281 : vector<4x256xi32>
    %c0_i32_76 = arith.constant 0 : i32
    %283 = vector.broadcast %c0_i32_76 : i32 to vector<4x256xi32>
    %284 = arith.cmpi ne, %282, %283 : vector<4x256xi32>
    %c0_i32_77 = arith.constant 0 : i32
    %285 = vector.broadcast %c0_i32_77 : i32 to vector<4x256xi32>
    %286 = arith.cmpi slt, %282, %285 : vector<4x256xi32>
    %c0_i32_78 = arith.constant 0 : i32
    %287 = arith.cmpi slt, %280, %c0_i32_78 : i32
    %288 = vector.broadcast %287 : i1 to vector<4x256xi1>
    %289 = vector.broadcast %288 : vector<4x256xi1> to vector<4x256xi1>
    %290 = arith.xori %286, %289 : vector<4x256xi1>
    %291 = arith.andi %290, %284 : vector<4x256xi1>
    %292 = vector.broadcast %280 : i32 to vector<4x256xi32>
    %293 = arith.addi %282, %292 : vector<4x256xi32>
    %294 = arith.select %291, %293, %282 : vector<4x256xi1>, vector<4x256xi32>
    %c-2_i32_79 = arith.constant -2 : i32
    %295 = vector.broadcast %c-2_i32_79 : i32 to vector<4x256xi32>
    %296 = arith.addi %294, %295 : vector<4x256xi32>
    %c0_i32_80 = arith.constant 0 : i32
    %297 = vector.broadcast %c0_i32_80 : i32 to vector<4x256xi32>
    %298 = arith.cmpi sge, %296, %297 : vector<4x256xi32>
    %c-2_i32_81 = arith.constant -2 : i32
    %299 = vector.broadcast %c-2_i32_81 : i32 to vector<4x256xi32>
    %300 = arith.addi %294, %299 : vector<4x256xi32>
    %c16_i32_82 = arith.constant 16 : i32
    %301 = vector.broadcast %c16_i32_82 : i32 to vector<4x256xi32>
    %302 = arith.cmpi slt, %300, %301 : vector<4x256xi32>
    %303 = arith.andi %298, %302 : vector<4x256xi1>
    %c-1_i32_83 = arith.constant -1 : i32
    %304 = vector.broadcast %c-1_i32_83 : i32 to vector<4x256xi32>
    %305 = arith.addi %294, %304 : vector<4x256xi32>
    %c0_i32_84 = arith.constant 0 : i32
    %306 = vector.broadcast %c0_i32_84 : i32 to vector<4x256xi32>
    %307 = arith.cmpi sge, %305, %306 : vector<4x256xi32>
    %c-1_i32_85 = arith.constant -1 : i32
    %308 = vector.broadcast %c-1_i32_85 : i32 to vector<4x256xi32>
    %309 = arith.addi %294, %308 : vector<4x256xi32>
    %c16_i32_86 = arith.constant 16 : i32
    %310 = vector.broadcast %c16_i32_86 : i32 to vector<4x256xi32>
    %311 = arith.cmpi slt, %309, %310 : vector<4x256xi32>
    %312 = arith.andi %307, %311 : vector<4x256xi1>
    %c1_i32_87 = arith.constant 1 : i32
    %313 = vector.broadcast %c1_i32_87 : i32 to vector<4x256xi32>
    %314 = arith.addi %294, %313 : vector<4x256xi32>
    %c0_i32_88 = arith.constant 0 : i32
    %315 = vector.broadcast %c0_i32_88 : i32 to vector<4x256xi32>
    %316 = arith.cmpi sge, %314, %315 : vector<4x256xi32>
    %c1_i32_89 = arith.constant 1 : i32
    %317 = vector.broadcast %c1_i32_89 : i32 to vector<4x256xi32>
    %318 = arith.addi %294, %317 : vector<4x256xi32>
    %c16_i32_90 = arith.constant 16 : i32
    %319 = vector.broadcast %c16_i32_90 : i32 to vector<4x256xi32>
    %320 = arith.cmpi slt, %318, %319 : vector<4x256xi32>
    %321 = arith.andi %316, %320 : vector<4x256xi1>
    %c2_i32_91 = arith.constant 2 : i32
    %322 = vector.broadcast %c2_i32_91 : i32 to vector<4x256xi32>
    %323 = arith.addi %294, %322 : vector<4x256xi32>
    %c0_i32_92 = arith.constant 0 : i32
    %324 = vector.broadcast %c0_i32_92 : i32 to vector<4x256xi32>
    %325 = arith.cmpi sge, %323, %324 : vector<4x256xi32>
    %c2_i32_93 = arith.constant 2 : i32
    %326 = vector.broadcast %c2_i32_93 : i32 to vector<4x256xi32>
    %327 = arith.addi %294, %326 : vector<4x256xi32>
    %c16_i32_94 = arith.constant 16 : i32
    %328 = vector.broadcast %c16_i32_94 : i32 to vector<4x256xi32>
    %329 = arith.cmpi slt, %327, %328 : vector<4x256xi32>
    %330 = arith.andi %325, %329 : vector<4x256xi1>
    %331 = vector.extract_strided_slice %277 {offsets = [0, 0], sizes = [4, 256], strides = [1, 1]} : vector<4x324xf32> to vector<4x256xf32>
    %cst_95 = arith.constant 0.000000e+00 : f32
    %332 = vector.broadcast %cst_95 : f32 to vector<4x256xf32>
    %333 = arith.select %303, %331, %332 : vector<4x256xi1>, vector<4x256xf32>
    %334 = vector.extract_strided_slice %273 {offsets = [0, 0], sizes = [4, 1], strides = [1, 1]} : vector<4x25xf32> to vector<4x1xf32>
    %335 = vector.broadcast %334 : vector<4x1xf32> to vector<4x256xf32>
    %336 = arith.mulf %335, %333 : vector<4x256xf32>
    %337 = vector.extract_strided_slice %277 {offsets = [0, 1], sizes = [4, 256], strides = [1, 1]} : vector<4x324xf32> to vector<4x256xf32>
    %cst_96 = arith.constant 0.000000e+00 : f32
    %338 = vector.broadcast %cst_96 : f32 to vector<4x256xf32>
    %339 = arith.select %312, %337, %338 : vector<4x256xi1>, vector<4x256xf32>
    %340 = vector.extract_strided_slice %273 {offsets = [0, 1], sizes = [4, 1], strides = [1, 1]} : vector<4x25xf32> to vector<4x1xf32>
    %341 = vector.broadcast %340 : vector<4x1xf32> to vector<4x256xf32>
    %342 = arith.mulf %341, %339 : vector<4x256xf32>
    %343 = arith.addf %336, %342 : vector<4x256xf32>
    %344 = vector.extract_strided_slice %277 {offsets = [0, 2], sizes = [4, 256], strides = [1, 1]} : vector<4x324xf32> to vector<4x256xf32>
    %345 = vector.extract_strided_slice %273 {offsets = [0, 2], sizes = [4, 1], strides = [1, 1]} : vector<4x25xf32> to vector<4x1xf32>
    %346 = vector.broadcast %345 : vector<4x1xf32> to vector<4x256xf32>
    %347 = arith.mulf %346, %344 : vector<4x256xf32>
    %348 = arith.addf %343, %347 : vector<4x256xf32>
    %349 = vector.extract_strided_slice %277 {offsets = [0, 3], sizes = [4, 256], strides = [1, 1]} : vector<4x324xf32> to vector<4x256xf32>
    %cst_97 = arith.constant 0.000000e+00 : f32
    %350 = vector.broadcast %cst_97 : f32 to vector<4x256xf32>
    %351 = arith.select %321, %349, %350 : vector<4x256xi1>, vector<4x256xf32>
    %352 = vector.extract_strided_slice %273 {offsets = [0, 3], sizes = [4, 1], strides = [1, 1]} : vector<4x25xf32> to vector<4x1xf32>
    %353 = vector.broadcast %352 : vector<4x1xf32> to vector<4x256xf32>
    %354 = arith.mulf %353, %351 : vector<4x256xf32>
    %355 = arith.addf %348, %354 : vector<4x256xf32>
    %356 = vector.extract_strided_slice %277 {offsets = [0, 4], sizes = [4, 256], strides = [1, 1]} : vector<4x324xf32> to vector<4x256xf32>
    %cst_98 = arith.constant 0.000000e+00 : f32
    %357 = vector.broadcast %cst_98 : f32 to vector<4x256xf32>
    %358 = arith.select %330, %356, %357 : vector<4x256xi1>, vector<4x256xf32>
    %359 = vector.extract_strided_slice %273 {offsets = [0, 4], sizes = [4, 1], strides = [1, 1]} : vector<4x25xf32> to vector<4x1xf32>
    %360 = vector.broadcast %359 : vector<4x1xf32> to vector<4x256xf32>
    %361 = arith.mulf %360, %358 : vector<4x256xf32>
    %362 = arith.addf %355, %361 : vector<4x256xf32>
    %363 = vector.extract_strided_slice %277 {offsets = [0, 16], sizes = [4, 256], strides = [1, 1]} : vector<4x324xf32> to vector<4x256xf32>
    %cst_99 = arith.constant 0.000000e+00 : f32
    %364 = vector.broadcast %cst_99 : f32 to vector<4x256xf32>
    %365 = arith.select %303, %363, %364 : vector<4x256xi1>, vector<4x256xf32>
    %366 = vector.extract_strided_slice %273 {offsets = [0, 5], sizes = [4, 1], strides = [1, 1]} : vector<4x25xf32> to vector<4x1xf32>
    %367 = vector.broadcast %366 : vector<4x1xf32> to vector<4x256xf32>
    %368 = arith.mulf %367, %365 : vector<4x256xf32>
    %369 = arith.addf %362, %368 : vector<4x256xf32>
    %370 = vector.extract_strided_slice %277 {offsets = [0, 17], sizes = [4, 256], strides = [1, 1]} : vector<4x324xf32> to vector<4x256xf32>
    %cst_100 = arith.constant 0.000000e+00 : f32
    %371 = vector.broadcast %cst_100 : f32 to vector<4x256xf32>
    %372 = arith.select %312, %370, %371 : vector<4x256xi1>, vector<4x256xf32>
    %373 = vector.extract_strided_slice %273 {offsets = [0, 6], sizes = [4, 1], strides = [1, 1]} : vector<4x25xf32> to vector<4x1xf32>
    %374 = vector.broadcast %373 : vector<4x1xf32> to vector<4x256xf32>
    %375 = arith.mulf %374, %372 : vector<4x256xf32>
    %376 = arith.addf %369, %375 : vector<4x256xf32>
    %377 = vector.extract_strided_slice %277 {offsets = [0, 18], sizes = [4, 256], strides = [1, 1]} : vector<4x324xf32> to vector<4x256xf32>
    %378 = vector.extract_strided_slice %273 {offsets = [0, 7], sizes = [4, 1], strides = [1, 1]} : vector<4x25xf32> to vector<4x1xf32>
    %379 = vector.broadcast %378 : vector<4x1xf32> to vector<4x256xf32>
    %380 = arith.mulf %379, %377 : vector<4x256xf32>
    %381 = arith.addf %376, %380 : vector<4x256xf32>
    %382 = vector.extract_strided_slice %277 {offsets = [0, 19], sizes = [4, 256], strides = [1, 1]} : vector<4x324xf32> to vector<4x256xf32>
    %cst_101 = arith.constant 0.000000e+00 : f32
    %383 = vector.broadcast %cst_101 : f32 to vector<4x256xf32>
    %384 = arith.select %321, %382, %383 : vector<4x256xi1>, vector<4x256xf32>
    %385 = vector.extract_strided_slice %273 {offsets = [0, 8], sizes = [4, 1], strides = [1, 1]} : vector<4x25xf32> to vector<4x1xf32>
    %386 = vector.broadcast %385 : vector<4x1xf32> to vector<4x256xf32>
    %387 = arith.mulf %386, %384 : vector<4x256xf32>
    %388 = arith.addf %381, %387 : vector<4x256xf32>
    %389 = vector.extract_strided_slice %277 {offsets = [0, 20], sizes = [4, 256], strides = [1, 1]} : vector<4x324xf32> to vector<4x256xf32>
    %cst_102 = arith.constant 0.000000e+00 : f32
    %390 = vector.broadcast %cst_102 : f32 to vector<4x256xf32>
    %391 = arith.select %330, %389, %390 : vector<4x256xi1>, vector<4x256xf32>
    %392 = vector.extract_strided_slice %273 {offsets = [0, 9], sizes = [4, 1], strides = [1, 1]} : vector<4x25xf32> to vector<4x1xf32>
    %393 = vector.broadcast %392 : vector<4x1xf32> to vector<4x256xf32>
    %394 = arith.mulf %393, %391 : vector<4x256xf32>
    %395 = arith.addf %388, %394 : vector<4x256xf32>
    %396 = vector.extract_strided_slice %277 {offsets = [0, 32], sizes = [4, 256], strides = [1, 1]} : vector<4x324xf32> to vector<4x256xf32>
    %cst_103 = arith.constant 0.000000e+00 : f32
    %397 = vector.broadcast %cst_103 : f32 to vector<4x256xf32>
    %398 = arith.select %303, %396, %397 : vector<4x256xi1>, vector<4x256xf32>
    %399 = vector.extract_strided_slice %273 {offsets = [0, 10], sizes = [4, 1], strides = [1, 1]} : vector<4x25xf32> to vector<4x1xf32>
    %400 = vector.broadcast %399 : vector<4x1xf32> to vector<4x256xf32>
    %401 = arith.mulf %400, %398 : vector<4x256xf32>
    %402 = arith.addf %395, %401 : vector<4x256xf32>
    %403 = vector.extract_strided_slice %277 {offsets = [0, 33], sizes = [4, 256], strides = [1, 1]} : vector<4x324xf32> to vector<4x256xf32>
    %cst_104 = arith.constant 0.000000e+00 : f32
    %404 = vector.broadcast %cst_104 : f32 to vector<4x256xf32>
    %405 = arith.select %312, %403, %404 : vector<4x256xi1>, vector<4x256xf32>
    %406 = vector.extract_strided_slice %273 {offsets = [0, 11], sizes = [4, 1], strides = [1, 1]} : vector<4x25xf32> to vector<4x1xf32>
    %407 = vector.broadcast %406 : vector<4x1xf32> to vector<4x256xf32>
    %408 = arith.mulf %407, %405 : vector<4x256xf32>
    %409 = arith.addf %402, %408 : vector<4x256xf32>
    %410 = vector.extract_strided_slice %277 {offsets = [0, 34], sizes = [4, 256], strides = [1, 1]} : vector<4x324xf32> to vector<4x256xf32>
    %411 = vector.extract_strided_slice %273 {offsets = [0, 12], sizes = [4, 1], strides = [1, 1]} : vector<4x25xf32> to vector<4x1xf32>
    %412 = vector.broadcast %411 : vector<4x1xf32> to vector<4x256xf32>
    %413 = arith.mulf %412, %410 : vector<4x256xf32>
    %414 = arith.addf %409, %413 : vector<4x256xf32>
    %415 = vector.extract_strided_slice %277 {offsets = [0, 35], sizes = [4, 256], strides = [1, 1]} : vector<4x324xf32> to vector<4x256xf32>
    %cst_105 = arith.constant 0.000000e+00 : f32
    %416 = vector.broadcast %cst_105 : f32 to vector<4x256xf32>
    %417 = arith.select %321, %415, %416 : vector<4x256xi1>, vector<4x256xf32>
    %418 = vector.extract_strided_slice %273 {offsets = [0, 13], sizes = [4, 1], strides = [1, 1]} : vector<4x25xf32> to vector<4x1xf32>
    %419 = vector.broadcast %418 : vector<4x1xf32> to vector<4x256xf32>
    %420 = arith.mulf %419, %417 : vector<4x256xf32>
    %421 = arith.addf %414, %420 : vector<4x256xf32>
    %422 = vector.extract_strided_slice %277 {offsets = [0, 36], sizes = [4, 256], strides = [1, 1]} : vector<4x324xf32> to vector<4x256xf32>
    %cst_106 = arith.constant 0.000000e+00 : f32
    %423 = vector.broadcast %cst_106 : f32 to vector<4x256xf32>
    %424 = arith.select %330, %422, %423 : vector<4x256xi1>, vector<4x256xf32>
    %425 = vector.extract_strided_slice %273 {offsets = [0, 14], sizes = [4, 1], strides = [1, 1]} : vector<4x25xf32> to vector<4x1xf32>
    %426 = vector.broadcast %425 : vector<4x1xf32> to vector<4x256xf32>
    %427 = arith.mulf %426, %424 : vector<4x256xf32>
    %428 = arith.addf %421, %427 : vector<4x256xf32>
    %429 = vector.extract_strided_slice %277 {offsets = [0, 48], sizes = [4, 256], strides = [1, 1]} : vector<4x324xf32> to vector<4x256xf32>
    %cst_107 = arith.constant 0.000000e+00 : f32
    %430 = vector.broadcast %cst_107 : f32 to vector<4x256xf32>
    %431 = arith.select %303, %429, %430 : vector<4x256xi1>, vector<4x256xf32>
    %432 = vector.extract_strided_slice %273 {offsets = [0, 15], sizes = [4, 1], strides = [1, 1]} : vector<4x25xf32> to vector<4x1xf32>
    %433 = vector.broadcast %432 : vector<4x1xf32> to vector<4x256xf32>
    %434 = arith.mulf %433, %431 : vector<4x256xf32>
    %435 = arith.addf %428, %434 : vector<4x256xf32>
    %436 = vector.extract_strided_slice %277 {offsets = [0, 49], sizes = [4, 256], strides = [1, 1]} : vector<4x324xf32> to vector<4x256xf32>
    %cst_108 = arith.constant 0.000000e+00 : f32
    %437 = vector.broadcast %cst_108 : f32 to vector<4x256xf32>
    %438 = arith.select %312, %436, %437 : vector<4x256xi1>, vector<4x256xf32>
    %439 = vector.extract_strided_slice %273 {offsets = [0, 16], sizes = [4, 1], strides = [1, 1]} : vector<4x25xf32> to vector<4x1xf32>
    %440 = vector.broadcast %439 : vector<4x1xf32> to vector<4x256xf32>
    %441 = arith.mulf %440, %438 : vector<4x256xf32>
    %442 = arith.addf %435, %441 : vector<4x256xf32>
    %443 = vector.extract_strided_slice %277 {offsets = [0, 50], sizes = [4, 256], strides = [1, 1]} : vector<4x324xf32> to vector<4x256xf32>
    %444 = vector.extract_strided_slice %273 {offsets = [0, 17], sizes = [4, 1], strides = [1, 1]} : vector<4x25xf32> to vector<4x1xf32>
    %445 = vector.broadcast %444 : vector<4x1xf32> to vector<4x256xf32>
    %446 = arith.mulf %445, %443 : vector<4x256xf32>
    %447 = arith.addf %442, %446 : vector<4x256xf32>
    %448 = vector.extract_strided_slice %277 {offsets = [0, 51], sizes = [4, 256], strides = [1, 1]} : vector<4x324xf32> to vector<4x256xf32>
    %cst_109 = arith.constant 0.000000e+00 : f32
    %449 = vector.broadcast %cst_109 : f32 to vector<4x256xf32>
    %450 = arith.select %321, %448, %449 : vector<4x256xi1>, vector<4x256xf32>
    %451 = vector.extract_strided_slice %273 {offsets = [0, 18], sizes = [4, 1], strides = [1, 1]} : vector<4x25xf32> to vector<4x1xf32>
    %452 = vector.broadcast %451 : vector<4x1xf32> to vector<4x256xf32>
    %453 = arith.mulf %452, %450 : vector<4x256xf32>
    %454 = arith.addf %447, %453 : vector<4x256xf32>
    %455 = vector.extract_strided_slice %277 {offsets = [0, 52], sizes = [4, 256], strides = [1, 1]} : vector<4x324xf32> to vector<4x256xf32>
    %cst_110 = arith.constant 0.000000e+00 : f32
    %456 = vector.broadcast %cst_110 : f32 to vector<4x256xf32>
    %457 = arith.select %330, %455, %456 : vector<4x256xi1>, vector<4x256xf32>
    %458 = vector.extract_strided_slice %273 {offsets = [0, 19], sizes = [4, 1], strides = [1, 1]} : vector<4x25xf32> to vector<4x1xf32>
    %459 = vector.broadcast %458 : vector<4x1xf32> to vector<4x256xf32>
    %460 = arith.mulf %459, %457 : vector<4x256xf32>
    %461 = arith.addf %454, %460 : vector<4x256xf32>
    %462 = vector.extract_strided_slice %277 {offsets = [0, 64], sizes = [4, 256], strides = [1, 1]} : vector<4x324xf32> to vector<4x256xf32>
    %cst_111 = arith.constant 0.000000e+00 : f32
    %463 = vector.broadcast %cst_111 : f32 to vector<4x256xf32>
    %464 = arith.select %303, %462, %463 : vector<4x256xi1>, vector<4x256xf32>
    %465 = vector.extract_strided_slice %273 {offsets = [0, 20], sizes = [4, 1], strides = [1, 1]} : vector<4x25xf32> to vector<4x1xf32>
    %466 = vector.broadcast %465 : vector<4x1xf32> to vector<4x256xf32>
    %467 = arith.mulf %466, %464 : vector<4x256xf32>
    %468 = arith.addf %461, %467 : vector<4x256xf32>
    %469 = vector.extract_strided_slice %277 {offsets = [0, 65], sizes = [4, 256], strides = [1, 1]} : vector<4x324xf32> to vector<4x256xf32>
    %cst_112 = arith.constant 0.000000e+00 : f32
    %470 = vector.broadcast %cst_112 : f32 to vector<4x256xf32>
    %471 = arith.select %312, %469, %470 : vector<4x256xi1>, vector<4x256xf32>
    %472 = vector.extract_strided_slice %273 {offsets = [0, 21], sizes = [4, 1], strides = [1, 1]} : vector<4x25xf32> to vector<4x1xf32>
    %473 = vector.broadcast %472 : vector<4x1xf32> to vector<4x256xf32>
    %474 = arith.mulf %473, %471 : vector<4x256xf32>
    %475 = arith.addf %468, %474 : vector<4x256xf32>
    %476 = vector.extract_strided_slice %277 {offsets = [0, 66], sizes = [4, 256], strides = [1, 1]} : vector<4x324xf32> to vector<4x256xf32>
    %477 = vector.extract_strided_slice %273 {offsets = [0, 22], sizes = [4, 1], strides = [1, 1]} : vector<4x25xf32> to vector<4x1xf32>
    %478 = vector.broadcast %477 : vector<4x1xf32> to vector<4x256xf32>
    %479 = arith.mulf %478, %476 : vector<4x256xf32>
    %480 = arith.addf %475, %479 : vector<4x256xf32>
    %481 = vector.extract_strided_slice %277 {offsets = [0, 67], sizes = [4, 256], strides = [1, 1]} : vector<4x324xf32> to vector<4x256xf32>
    %cst_113 = arith.constant 0.000000e+00 : f32
    %482 = vector.broadcast %cst_113 : f32 to vector<4x256xf32>
    %483 = arith.select %321, %481, %482 : vector<4x256xi1>, vector<4x256xf32>
    %484 = vector.extract_strided_slice %273 {offsets = [0, 23], sizes = [4, 1], strides = [1, 1]} : vector<4x25xf32> to vector<4x1xf32>
    %485 = vector.broadcast %484 : vector<4x1xf32> to vector<4x256xf32>
    %486 = arith.mulf %485, %483 : vector<4x256xf32>
    %487 = arith.addf %480, %486 : vector<4x256xf32>
    %488 = vector.extract_strided_slice %277 {offsets = [0, 68], sizes = [4, 256], strides = [1, 1]} : vector<4x324xf32> to vector<4x256xf32>
    %cst_114 = arith.constant 0.000000e+00 : f32
    %489 = vector.broadcast %cst_114 : f32 to vector<4x256xf32>
    %490 = arith.select %330, %488, %489 : vector<4x256xi1>, vector<4x256xf32>
    %491 = vector.extract_strided_slice %273 {offsets = [0, 24], sizes = [4, 1], strides = [1, 1]} : vector<4x25xf32> to vector<4x1xf32>
    %492 = vector.broadcast %491 : vector<4x1xf32> to vector<4x256xf32>
    %493 = arith.mulf %492, %490 : vector<4x256xf32>
    %494 = arith.addf %487, %493 : vector<4x256xf32>
    %495 = vector.broadcast %274 : vector<4x1xf32> to vector<4x256xf32>
    %496 = arith.mulf %494, %495 : vector<4x256xf32>
    %497 = vector.broadcast %275 : vector<4x1xf32> to vector<4x256xf32>
    %498 = arith.addf %496, %497 : vector<4x256xf32>
    %499 = tpu.concatenate %272, %498 in 0 : vector<4x256xf32>, vector<4x256xf32> -> vector<8x256xf32>
    %500 = arith.addf %499, %1 : vector<8x256xf32>
    %c0_115 = arith.constant 0 : index
    %c0_116 = arith.constant 0 : index
    %c0_117 = arith.constant 0 : index
    %501 = vector.load %arg14[%c0_115, %c0_116, %c0_117] : memref<1x8x256xf32, #tpu.memory_space<vmem>>, vector<1x8x256xf32>
    %502 = vector.shape_cast %501 : vector<1x8x256xf32> to vector<8x256xf32>
    %503 = vector.shape_cast %500 : vector<8x256xf32> to vector<1x8x256xf32>
    tpu.vector_store %arg14[%c0_115, %c0_116, %c0_117], %503 {strides = array<i32>} : memref<1x8x256xf32, #tpu.memory_space<vmem>>, vector<1x8x256xf32>,
    return
  }
  func.func @transform_0(%arg0: i32) -> (i32, i32, i32) {
    %c0_i32 = arith.constant 0 : i32
    %c0_i32_0 = arith.constant 0 : i32
    %c0_i32_1 = arith.constant 0 : i32
    return %arg0, %c0_i32, %c0_i32_0 : i32, i32, i32
  }
  func.func @transform_1(%arg0: i32) -> (i32, i32) {
    %c0_i32 = arith.constant 0 : i32
    %c0_i32_0 = arith.constant 0 : i32
    %c0_i32_1 = arith.constant 0 : i32
    return %c0_i32, %c0_i32_0 : i32, i32
  }
  func.func @transform_2(%arg0: i32) -> (i32, i32) {
    %c0_i32 = arith.constant 0 : i32
    %c0_i32_0 = arith.constant 0 : i32
    %c0_i32_1 = arith.constant 0 : i32
    return %c0_i32, %c0_i32_0 : i32, i32
  }
  func.func @transform_3(%arg0: i32) -> (i32, i32) {
    %c0_i32 = arith.constant 0 : i32
    %c0_i32_0 = arith.constant 0 : i32
    %c0_i32_1 = arith.constant 0 : i32
    return %c0_i32, %c0_i32_0 : i32, i32
  }
  func.func @transform_4(%arg0: i32) -> (i32, i32) {
    %c0_i32 = arith.constant 0 : i32
    %c0_i32_0 = arith.constant 0 : i32
    %c0_i32_1 = arith.constant 0 : i32
    return %c0_i32, %c0_i32_0 : i32, i32
  }
  func.func @transform_5(%arg0: i32) -> (i32, i32) {
    %c0_i32 = arith.constant 0 : i32
    %c0_i32_0 = arith.constant 0 : i32
    %c0_i32_1 = arith.constant 0 : i32
    return %c0_i32, %c0_i32_0 : i32, i32
  }
  func.func @transform_6(%arg0: i32) -> (i32, i32) {
    %c0_i32 = arith.constant 0 : i32
    %c0_i32_0 = arith.constant 0 : i32
    %c0_i32_1 = arith.constant 0 : i32
    return %c0_i32, %c0_i32_0 : i32, i32
  }
  func.func @transform_7(%arg0: i32) -> (i32, i32) {
    %c0_i32 = arith.constant 0 : i32
    %c0_i32_0 = arith.constant 0 : i32
    %c0_i32_1 = arith.constant 0 : i32
    return %c0_i32, %c0_i32_0 : i32, i32
  }
  func.func @transform_8(%arg0: i32) -> (i32, i32) {
    %c0_i32 = arith.constant 0 : i32
    %c0_i32_0 = arith.constant 0 : i32
    %c0_i32_1 = arith.constant 0 : i32
    return %c0_i32, %c0_i32_0 : i32, i32
  }
  func.func @transform_9(%arg0: i32) -> (i32, i32) {
    %c0_i32 = arith.constant 0 : i32
    %c0_i32_0 = arith.constant 0 : i32
    %c0_i32_1 = arith.constant 0 : i32
    return %c0_i32, %c0_i32_0 : i32, i32
  }
  func.func @transform_10(%arg0: i32) -> (i32, i32) {
    %c0_i32 = arith.constant 0 : i32
    %c0_i32_0 = arith.constant 0 : i32
    %c0_i32_1 = arith.constant 0 : i32
    return %c0_i32, %c0_i32_0 : i32, i32
  }
  func.func @transform_11(%arg0: i32) -> (i32, i32) {
    %c0_i32 = arith.constant 0 : i32
    %c0_i32_0 = arith.constant 0 : i32
    %c0_i32_1 = arith.constant 0 : i32
    return %c0_i32, %c0_i32_0 : i32, i32
  }
  func.func @transform_12(%arg0: i32) -> (i32, i32) {
    %c0_i32 = arith.constant 0 : i32
    %c0_i32_0 = arith.constant 0 : i32
    %c0_i32_1 = arith.constant 0 : i32
    return %c0_i32, %c0_i32_0 : i32, i32
  }
  func.func @transform_13(%arg0: i32) -> (i32, i32, i32) {
    %c0_i32 = arith.constant 0 : i32
    %c0_i32_0 = arith.constant 0 : i32
    %c0_i32_1 = arith.constant 0 : i32
    return %arg0, %c0_i32, %c0_i32_0 : i32, i32, i32
  }
}

</mosaic_0001>

<llo_original>
// kernel: tpu_custom_call.1
$region0: #{tpu_custom_call.1}
  #allocation0 [shape = 'u32[]', space=smem, size = 0x4, offset = 0x4, fixed_abs, tag = 'smem constant byte address 0x4 - core index']
  #allocation1 [shape = 'u32[144,128]{1,0:T(1,128)}', space=vmem, size = 0x12000, scoped, tag = 'internal scratch']
  %s0 = inlined_call_operand.vmem [shape: f32[2,8,256], index: 0, kind: input, shape index: {}]
  %s1 = inlined_call_operand.hbm [shape: bf16[2,8], index: 1, kind: input, shape index: {}]
  %s2 = inlined_call_operand.vmem [shape: f32[2,25], index: 2, kind: input, shape index: {}]
  %s3 = inlined_call_operand.vmem [shape: f32[2,1], index: 3, kind: input, shape index: {}]
  %s4 = inlined_call_operand.vmem [shape: f32[2,1], index: 4, kind: input, shape index: {}]
  %s5 = inlined_call_operand.vmem [shape: f32[2,1], index: 5, kind: input, shape index: {}]
  %s6 = inlined_call_operand.vmem [shape: f32[2,1], index: 6, kind: input, shape index: {}]
  %s7 = inlined_call_operand.vmem [shape: bf16[4,4], index: 7, kind: input, shape index: {}]
  %s8 = inlined_call_operand.vmem [shape: f32[4,25], index: 8, kind: input, shape index: {}]
  %s9 = inlined_call_operand.vmem [shape: f32[4,1], index: 9, kind: input, shape index: {}]
  %s10 = inlined_call_operand.vmem [shape: f32[4,1], index: 10, kind: input, shape index: {}]
  %s11 = inlined_call_operand.vmem [shape: f32[4,1], index: 11, kind: input, shape index: {}]
  %s12 = inlined_call_operand.vmem [shape: f32[4,1], index: 12, kind: input, shape index: {}]
  %s13 = inlined_call_operand.hbm [shape: f32[2,8,256], index: 13, kind: output, shape index: {}]
  %s14 = sld [smem:[#allocation0]]
  $region89: #{tpu_custom_call.1} parent=0
    _
  %s16 = ssub.s32 1, %s14
  %s17 = scalar_select 0, %s16, %s14
  $region1: #{tpu_custom_call.1} parent=0
    #allocation2 [shape = 'u8[512]{0}', space=vmem, size = 0x400, scoped, tag = 'input window, operand 1, single buffered']
    #allocation3 [shape = 's32[2]{0}', space=sflag, size = 0x8, scoped, tag = 'scoped memory for tpu_custom_call.1']
    #allocation4 [shape = 's32[2]{0}', space=sflag, size = 0x8, scoped, tag = 'scoped memory for tpu_custom_call.1']
    #allocation5 [shape = 'u8[16384]{0}', space=vmem, size = 0x4000, scoped, tag = 'output window, operand 0']
    %18 = vsyncpa [#allocation3], 0
    %19 = vsyncpa [#allocation4], 0
    %s20 = scalar_lea.sflag [#allocation4], 1
    %21 = vsyncpa %s20, 0
    loop: start=0, step=1, limit=4
    $region2: #{tpu_custom_call.1} parent=1 // loop_pre_header
      _
    $region3: #{tpu_custom_call.1} parent=1 // loop_header
      %s23 = sphi 0, %s27
      %p24 = scmp.ge.s32.totalorder %s23, 4
      %s33 = sphi 0, %s35
      %s36 = sphi 0, %s33
      %s37 = sphi 0, %s36
      %s53 = sphi 0, %s37
      %s57 = sphi 0, %s57
      %s59 = sphi 0, %s57
      %s60 = sphi 0, %s59
      %s74 = sphi 0, %s60
      %s78 = sphi 0, %s78
      %s80 = sphi 0, %s78
      %s81 = sphi 0, %s80
      %s95 = sphi 0, %s81
      %s99 = sphi 0, %s99
      %s101 = sphi 0, %s99
      %s102 = sphi 0, %s101
      %s116 = sphi 0, %s102
      %s120 = sphi 0, %s120
      %s122 = sphi 0, %s120
      %s123 = sphi 0, %s122
      %s137 = sphi 0, %s123
      %s141 = sphi 0, %s141
      %s143 = sphi 0, %s141
      %s144 = sphi 0, %s143
      %s158 = sphi 0, %s144
      %s162 = sphi 0, %s162
      %s164 = sphi 0, %s162
      %s165 = sphi 0, %s164
      %s179 = sphi 0, %s165
      %s183 = sphi 0, %s183
      %s185 = sphi 0, %s183
      %s186 = sphi 0, %s185
      %s200 = sphi 0, %s186
      %s204 = sphi 0, %s204
      %s206 = sphi 0, %s204
      %s207 = sphi 0, %s206
      %s221 = sphi 0, %s207
      %s225 = sphi 0, %s225
      %s227 = sphi 0, %s225
      %s228 = sphi 0, %s227
      %s242 = sphi 0, %s228
      %s246 = sphi 0, %s246
      %s248 = sphi 0, %s246
      %s249 = sphi 0, %s248
      %s263 = sphi 0, %s249
      %s267 = sphi 0, %s267
      %s269 = sphi 0, %s267
      %s270 = sphi 0, %s269
      %s284 = sphi 0, %s270
      %s288 = sphi 0, %s288
      %s290 = sphi 0, %s288
      %s291 = sphi 0, %s290
      %s305 = sphi 0, %s291
      %s311 = sphi 0, %s313
      %s314 = sphi 0, %s311
      %s315 = sphi 0, %s314
      %s331 = sphi 0, %s315
    $region4: #{tpu_custom_call.1} parent=1 // loop_header_branch
      %26 = sbr.rel (%p24) target = $region8
    $region5: #{tpu_custom_call.1} parent=1 // loop_body
      %s28 = ssub.s32 %s23, 1
      %s29 = ssub.s32 %s23, 2
      %s30 = sadd.s32 %s23, 1
      %s31 = ssub.s32 %s23, %s30
      %p32 = scmp.eq.s32.totalorder %s31, 0
      %s34 = sadd.s32 %s33, 1
      %s35 = scalar_select %p32, %s33, %s34
      %p38 = pneg %p32
      %p39 = scmp.eq.s32.totalorder %s23, 1
      %p40 = por %p38, %p39
      %p41 = scmp.ne.s32.totalorder %s33, %s36
      %p42 = scmp.eq.s32.totalorder %s23, 0
      %p43 = por %p41, %p42
      %p44 = scmp.ne.s32.totalorder %s33, %s36
      %p45 = scmp.eq.s32.totalorder %s28, 1
      %p46 = por %p44, %p45
      %p47 = scmp.ne.s32.totalorder %s36, %s37
      %p48 = scmp.eq.s32.totalorder %s28, 0
      %p49 = por %p47, %p48
      %p50 = scmp.ne.s32.totalorder %s36, %s37
      %p51 = scmp.eq.s32.totalorder %s29, 1
      %p52 = por %p50, %p51
      %p54 = scmp.ne.s32.totalorder %s37, %s53
      %p55 = scmp.eq.s32.totalorder %s29, 0
      %p56 = por %p54, %p55
      %s58 = sadd.s32 %s57, 1
      %p61 = scmp.eq.s32.totalorder %s23, 1
      %p62 = scmp.ne.s32.totalorder %s57, %s59
      %p63 = scmp.eq.s32.totalorder %s23, 0
      %p64 = por %p62, %p63
      %p65 = scmp.ne.s32.totalorder %s57, %s59
      %p66 = scmp.eq.s32.totalorder %s28, 1
      %p67 = por %p65, %p66
      %p68 = scmp.ne.s32.totalorder %s59, %s60
      %p69 = scmp.eq.s32.totalorder %s28, 0
      %p70 = por %p68, %p69
      %p71 = scmp.ne.s32.totalorder %s59, %s60
      %p72 = scmp.eq.s32.totalorder %s29, 1
      %p73 = por %p71, %p72
      %p75 = scmp.ne.s32.totalorder %s60, %s74
      %p76 = scmp.eq.s32.totalorder %s29, 0
      %p77 = por %p75, %p76
      %s79 = sadd.s32 %s78, 1
      %p82 = scmp.eq.s32.totalorder %s23, 1
      %p83 = scmp.ne.s32.totalorder %s78, %s80
      %p84 = scmp.eq.s32.totalorder %s23, 0
      %p85 = por %p83, %p84
      %p86 = scmp.ne.s32.totalorder %s78, %s80
      %p87 = scmp.eq.s32.totalorder %s28, 1
      %p88 = por %p86, %p87
      %p89 = scmp.ne.s32.totalorder %s80, %s81
      %p90 = scmp.eq.s32.totalorder %s28, 0
      %p91 = por %p89, %p90
      %p92 = scmp.ne.s32.totalorder %s80, %s81
      %p93 = scmp.eq.s32.totalorder %s29, 1
      %p94 = por %p92, %p93
      %p96 = scmp.ne.s32.totalorder %s81, %s95
      %p97 = scmp.eq.s32.totalorder %s29, 0
      %p98 = por %p96, %p97
      %s100 = sadd.s32 %s99, 1
      %p103 = scmp.eq.s32.totalorder %s23, 1
      %p104 = scmp.ne.s32.totalorder %s99, %s101
      %p105 = scmp.eq.s32.totalorder %s23, 0
      %p106 = por %p104, %p105
      %p107 = scmp.ne.s32.totalorder %s99, %s101
      %p108 = scmp.eq.s32.totalorder %s28, 1
      %p109 = por %p107, %p108
      %p110 = scmp.ne.s32.totalorder %s101, %s102
      %p111 = scmp.eq.s32.totalorder %s28, 0
      %p112 = por %p110, %p111
      %p113 = scmp.ne.s32.totalorder %s101, %s102
      %p114 = scmp.eq.s32.totalorder %s29, 1
      %p115 = por %p113, %p114
      %p117 = scmp.ne.s32.totalorder %s102, %s116
      %p118 = scmp.eq.s32.totalorder %s29, 0
      %p119 = por %p117, %p118
      %s121 = sadd.s32 %s120, 1
      %p124 = scmp.eq.s32.totalorder %s23, 1
      %p125 = scmp.ne.s32.totalorder %s120, %s122
      %p126 = scmp.eq.s32.totalorder %s23, 0
      %p127 = por %p125, %p126
      %p128 = scmp.ne.s32.totalorder %s120, %s122
      %p129 = scmp.eq.s32.totalorder %s28, 1
      %p130 = por %p128, %p129
      %p131 = scmp.ne.s32.totalorder %s122, %s123
      %p132 = scmp.eq.s32.totalorder %s28, 0
      %p133 = por %p131, %p132
      %p134 = scmp.ne.s32.totalorder %s122, %s123
      %p135 = scmp.eq.s32.totalorder %s29, 1
      %p136 = por %p134, %p135
      %p138 = scmp.ne.s32.totalorder %s123, %s137
      %p139 = scmp.eq.s32.totalorder %s29, 0
      %p140 = por %p138, %p139
      %s142 = sadd.s32 %s141, 1
      %p145 = scmp.eq.s32.totalorder %s23, 1
      %p146 = scmp.ne.s32.totalorder %s141, %s143
      %p147 = scmp.eq.s32.totalorder %s23, 0
      %p148 = por %p146, %p147
      %p149 = scmp.ne.s32.totalorder %s141, %s143
      %p150 = scmp.eq.s32.totalorder %s28, 1
      %p151 = por %p149, %p150
      %p152 = scmp.ne.s32.totalorder %s143, %s144
      %p153 = scmp.eq.s32.totalorder %s28, 0
      %p154 = por %p152, %p153
      %p155 = scmp.ne.s32.totalorder %s143, %s144
      %p156 = scmp.eq.s32.totalorder %s29, 1
      %p157 = por %p155, %p156
      %p159 = scmp.ne.s32.totalorder %s144, %s158
      %p160 = scmp.eq.s32.totalorder %s29, 0
      %p161 = por %p159, %p160
      %s163 = sadd.s32 %s162, 1
      %p166 = scmp.eq.s32.totalorder %s23, 1
      %p167 = scmp.ne.s32.totalorder %s162, %s164
      %p168 = scmp.eq.s32.totalorder %s23, 0
      %p169 = por %p167, %p168
      %p170 = scmp.ne.s32.totalorder %s162, %s164
      %p171 = scmp.eq.s32.totalorder %s28, 1
      %p172 = por %p170, %p171
      %p173 = scmp.ne.s32.totalorder %s164, %s165
      %p174 = scmp.eq.s32.totalorder %s28, 0
      %p175 = por %p173, %p174
      %p176 = scmp.ne.s32.totalorder %s164, %s165
      %p177 = scmp.eq.s32.totalorder %s29, 1
      %p178 = por %p176, %p177
      %p180 = scmp.ne.s32.totalorder %s165, %s179
      %p181 = scmp.eq.s32.totalorder %s29, 0
      %p182 = por %p180, %p181
      %s184 = sadd.s32 %s183, 1
      %p187 = scmp.eq.s32.totalorder %s23, 1
      %p188 = scmp.ne.s32.totalorder %s183, %s185
      %p189 = scmp.eq.s32.totalorder %s23, 0
      %p190 = por %p188, %p189
      %p191 = scmp.ne.s32.totalorder %s183, %s185
      %p192 = scmp.eq.s32.totalorder %s28, 1
      %p193 = por %p191, %p192
      %p194 = scmp.ne.s32.totalorder %s185, %s186
      %p195 = scmp.eq.s32.totalorder %s28, 0
      %p196 = por %p194, %p195
      %p197 = scmp.ne.s32.totalorder %s185, %s186
      %p198 = scmp.eq.s32.totalorder %s29, 1
      %p199 = por %p197, %p198
      %p201 = scmp.ne.s32.totalorder %s186, %s200
      %p202 = scmp.eq.s32.totalorder %s29, 0
      %p203 = por %p201, %p202
      %s205 = sadd.s32 %s204, 1
      %p208 = scmp.eq.s32.totalorder %s23, 1
      %p209 = scmp.ne.s32.totalorder %s204, %s206
      %p210 = scmp.eq.s32.totalorder %s23, 0
      %p211 = por %p209, %p210
      %p212 = scmp.ne.s32.totalorder %s204, %s206
      %p213 = scmp.eq.s32.totalorder %s28, 1
      %p214 = por %p212, %p213
      %p215 = scmp.ne.s32.totalorder %s206, %s207
      %p216 = scmp.eq.s32.totalorder %s28, 0
      %p217 = por %p215, %p216
      %p218 = scmp.ne.s32.totalorder %s206, %s207
      %p219 = scmp.eq.s32.totalorder %s29, 1
      %p220 = por %p218, %p219
      %p222 = scmp.ne.s32.totalorder %s207, %s221
      %p223 = scmp.eq.s32.totalorder %s29, 0
      %p224 = por %p222, %p223
      %s226 = sadd.s32 %s225, 1
      %p229 = scmp.eq.s32.totalorder %s23, 1
      %p230 = scmp.ne.s32.totalorder %s225, %s227
      %p231 = scmp.eq.s32.totalorder %s23, 0
      %p232 = por %p230, %p231
      %p233 = scmp.ne.s32.totalorder %s225, %s227
      %p234 = scmp.eq.s32.totalorder %s28, 1
      %p235 = por %p233, %p234
      %p236 = scmp.ne.s32.totalorder %s227, %s228
      %p237 = scmp.eq.s32.totalorder %s28, 0
      %p238 = por %p236, %p237
      %p239 = scmp.ne.s32.totalorder %s227, %s228
      %p240 = scmp.eq.s32.totalorder %s29, 1
      %p241 = por %p239, %p240
      %p243 = scmp.ne.s32.totalorder %s228, %s242
      %p244 = scmp.eq.s32.totalorder %s29, 0
      %p245 = por %p243, %p244
      %s247 = sadd.s32 %s246, 1
      %p250 = scmp.eq.s32.totalorder %s23, 1
      %p251 = scmp.ne.s32.totalorder %s246, %s248
      %p252 = scmp.eq.s32.totalorder %s23, 0
      %p253 = por %p251, %p252
      %p254 = scmp.ne.s32.totalorder %s246, %s248
      %p255 = scmp.eq.s32.totalorder %s28, 1
      %p256 = por %p254, %p255
      %p257 = scmp.ne.s32.totalorder %s248, %s249
      %p258 = scmp.eq.s32.totalorder %s28, 0
      %p259 = por %p257, %p258
      %p260 = scmp.ne.s32.totalorder %s248, %s249
      %p261 = scmp.eq.s32.totalorder %s29, 1
      %p262 = por %p260, %p261
      %p264 = scmp.ne.s32.totalorder %s249, %s263
      %p265 = scmp.eq.s32.totalorder %s29, 0
      %p266 = por %p264, %p265
      %s268 = sadd.s32 %s267, 1
      %p271 = scmp.eq.s32.totalorder %s23, 1
      %p272 = scmp.ne.s32.totalorder %s267, %s269
      %p273 = scmp.eq.s32.totalorder %s23, 0
      %p274 = por %p272, %p273
      %p275 = scmp.ne.s32.totalorder %s267, %s269
      %p276 = scmp.eq.s32.totalorder %s28, 1
      %p277 = por %p275, %p276
      %p278 = scmp.ne.s32.totalorder %s269, %s270
      %p279 = scmp.eq.s32.totalorder %s28, 0
      %p280 = por %p278, %p279
      %p281 = scmp.ne.s32.totalorder %s269, %s270
      %p282 = scmp.eq.s32.totalorder %s29, 1
      %p283 = por %p281, %p282
      %p285 = scmp.ne.s32.totalorder %s270, %s284
      %p286 = scmp.eq.s32.totalorder %s29, 0
      %p287 = por %p285, %p286
      %s289 = sadd.s32 %s288, 1
      %p292 = scmp.eq.s32.totalorder %s23, 1
      %p293 = scmp.ne.s32.totalorder %s288, %s290
      %p294 = scmp.eq.s32.totalorder %s23, 0
      %p295 = por %p293, %p294
      %p296 = scmp.ne.s32.totalorder %s288, %s290
      %p297 = scmp.eq.s32.totalorder %s28, 1
      %p298 = por %p296, %p297
      %p299 = scmp.ne.s32.totalorder %s290, %s291
      %p300 = scmp.eq.s32.totalorder %s28, 0
      %p301 = por %p299, %p300
      %p302 = scmp.ne.s32.totalorder %s290, %s291
      %p303 = scmp.eq.s32.totalorder %s29, 1
      %p304 = por %p302, %p303
      %p306 = scmp.ne.s32.totalorder %s291, %s305
      %p307 = scmp.eq.s32.totalorder %s29, 0
      %p308 = por %p306, %p307
      %s309 = ssub.s32 %s23, %s30
      %p310 = scmp.eq.s32.totalorder %s309, 0
      %s312 = sadd.s32 %s311, 1
      %s313 = scalar_select %p310, %s311, %s312
      %p316 = pneg %p310
      %p317 = scmp.eq.s32.totalorder %s23, 1
      %p318 = por %p316, %p317
      %p319 = scmp.ne.s32.totalorder %s311, %s314
      %p320 = scmp.eq.s32.totalorder %s23, 0
      %p321 = por %p319, %p320
      %p322 = scmp.ne.s32.totalorder %s311, %s314
      %p323 = scmp.eq.s32.totalorder %s28, 1
      %p324 = por %p322, %p323
      %p325 = scmp.ne.s32.totalorder %s314, %s315
      %p326 = scmp.eq.s32.totalorder %s28, 0
      %p327 = por %p325, %p326
      %p328 = scmp.ne.s32.totalorder %s314, %s315
      %p329 = scmp.eq.s32.totalorder %s29, 1
      %p330 = por %p328, %p329
      %p332 = scmp.ne.s32.totalorder %s315, %s331
      %p333 = scmp.eq.s32.totalorder %s29, 0
      %p334 = por %p332, %p333
      %p335 = scmp.le.s32.totalorder 1, %s23
      %p336 = scmp.lt.s32.totalorder %s23, 3
      %p337 = pnand %p335, %p336
      %p338 = pneg %p337
      // Predicated region
      $region9: #{tpu_custom_call.1} parent=5 // pred_check
        _
      $region10: #{tpu_custom_call.1} parent=5 // pred_check_branch
        %340 = sbr.rel (%p337) target = $region12
      $region11: #{tpu_custom_call.1} parent=5 // pred_region
        %s341 = ssub.s32 %s23, 1
        // Predicated region
        $region13: #{tpu_custom_call.1} parent=11 // pred_check
          %p342 = pneg %p70
        $region14: #{tpu_custom_call.1} parent=11 // pred_check_branch
          %344 = sbr.rel (%p342) target = $region16
        $region15: #{tpu_custom_call.1} parent=11 // pred_region
          %s346 = ssub.s32 16, 16
          %347 = vsyncadd [#allocation3], %s346
          %s349 = sshll.u32 [#allocation2], 4
          %s350 = int_to_ptr.vmem [resolvable:$true] %s349
          %352 = dma.hbm_to_vmem [thread:$0]  %s1, 16, %s350, [#allocation3]
        $region16: #{tpu_custom_call.1} parent=11 // pred_fallthru
          _
        // Predicated region
        $region17: #{tpu_custom_call.1} parent=11 // pred_check
          %p353 = pneg %p91
        $region18: #{tpu_custom_call.1} parent=11 // pred_check_branch
          %355 = sbr.rel (%p353) target = $region20
        $region19: #{tpu_custom_call.1} parent=11 // pred_region
          _
        $region20: #{tpu_custom_call.1} parent=11 // pred_fallthru
          _
        // Predicated region
        $region21: #{tpu_custom_call.1} parent=11 // pred_check
          %p356 = pneg %p112
        $region22: #{tpu_custom_call.1} parent=11 // pred_check_branch
          %358 = sbr.rel (%p356) target = $region24
        $region23: #{tpu_custom_call.1} parent=11 // pred_region
          _
        $region24: #{tpu_custom_call.1} parent=11 // pred_fallthru
          _
        // Predicated region
        $region25: #{tpu_custom_call.1} parent=11 // pred_check
          %p359 = pneg %p133
        $region26: #{tpu_custom_call.1} parent=11 // pred_check_branch
          %361 = sbr.rel (%p359) target = $region28
        $region27: #{tpu_custom_call.1} parent=11 // pred_region
          _
        $region28: #{tpu_custom_call.1} parent=11 // pred_fallthru
          _
        // Predicated region
        $region29: #{tpu_custom_call.1} parent=11 // pred_check
          %p362 = pneg %p154
        $region30: #{tpu_custom_call.1} parent=11 // pred_check_branch
          %364 = sbr.rel (%p362) target = $region32
        $region31: #{tpu_custom_call.1} parent=11 // pred_region
          _
        $region32: #{tpu_custom_call.1} parent=11 // pred_fallthru
          _
        // Predicated region
        $region33: #{tpu_custom_call.1} parent=11 // pred_check
          %p365 = pneg %p175
        $region34: #{tpu_custom_call.1} parent=11 // pred_check_branch
          %367 = sbr.rel (%p365) target = $region36
        $region35: #{tpu_custom_call.1} parent=11 // pred_region
          _
        $region36: #{tpu_custom_call.1} parent=11 // pred_fallthru
          _
        // Predicated region
        $region37: #{tpu_custom_call.1} parent=11 // pred_check
          %p368 = pneg %p196
        $region38: #{tpu_custom_call.1} parent=11 // pred_check_branch
          %370 = sbr.rel (%p368) target = $region40
        $region39: #{tpu_custom_call.1} parent=11 // pred_region
          _
        $region40: #{tpu_custom_call.1} parent=11 // pred_fallthru
          _
        // Predicated region
        $region41: #{tpu_custom_call.1} parent=11 // pred_check
          %p371 = pneg %p217
        $region42: #{tpu_custom_call.1} parent=11 // pred_check_branch
          %373 = sbr.rel (%p371) target = $region44
        $region43: #{tpu_custom_call.1} parent=11 // pred_region
          _
        $region44: #{tpu_custom_call.1} parent=11 // pred_fallthru
          _
        // Predicated region
        $region45: #{tpu_custom_call.1} parent=11 // pred_check
          %p374 = pneg %p238
        $region46: #{tpu_custom_call.1} parent=11 // pred_check_branch
          %376 = sbr.rel (%p374) target = $region48
        $region47: #{tpu_custom_call.1} parent=11 // pred_region
          _
        $region48: #{tpu_custom_call.1} parent=11 // pred_fallthru
          _
        // Predicated region
        $region49: #{tpu_custom_call.1} parent=11 // pred_check
          %p377 = pneg %p259
        $region50: #{tpu_custom_call.1} parent=11 // pred_check_branch
          %379 = sbr.rel (%p377) target = $region52
        $region51: #{tpu_custom_call.1} parent=11 // pred_region
          _
        $region52: #{tpu_custom_call.1} parent=11 // pred_fallthru
          _
        // Predicated region
        $region53: #{tpu_custom_call.1} parent=11 // pred_check
          %p380 = pneg %p280
        $region54: #{tpu_custom_call.1} parent=11 // pred_check_branch
          %382 = sbr.rel (%p380) target = $region56
        $region55: #{tpu_custom_call.1} parent=11 // pred_region
          _
        $region56: #{tpu_custom_call.1} parent=11 // pred_fallthru
          _
        // Predicated region
        $region57: #{tpu_custom_call.1} parent=11 // pred_check
          %p383 = pneg %p301
        $region58: #{tpu_custom_call.1} parent=11 // pred_check_branch
          %385 = sbr.rel (%p383) target = $region60
        $region59: #{tpu_custom_call.1} parent=11 // pred_region
          _
        $region60: #{tpu_custom_call.1} parent=11 // pred_fallthru
          _
      $region12: #{tpu_custom_call.1} parent=5 // pred_fallthru
        _
      %p386 = scmp.lt.s32.totalorder %s23, 2
      // Predicated region
      $region61: #{tpu_custom_call.1} parent=5 // pred_check
        %p387 = pneg %p386
      $region62: #{tpu_custom_call.1} parent=5 // pred_check_branch
        %389 = sbr.rel (%p387) target = $region64
      $region63: #{tpu_custom_call.1} parent=5 // pred_region
        // Predicated region
        $region65: #{tpu_custom_call.1} parent=63 // pred_check
          %p390 = pneg %p43
        $region66: #{tpu_custom_call.1} parent=63 // pred_check_branch
          %392 = sbr.rel (%p390) target = $region68
        $region67: #{tpu_custom_call.1} parent=63 // pred_region
          %p393 = scmp.lt.s32.totalorder %s23, 1
          %s394 = scalar_select %p393, %s23, 1
          %s395 = smul.addr %s394, 2
          %s396 = smul.addr %s395, 8
          %s397 = scalar_lea.vmem %s0, %s396
        $region68: #{tpu_custom_call.1} parent=63 // pred_fallthru
          _
      $region64: #{tpu_custom_call.1} parent=5 // pred_fallthru
        _
      %p398 = scmp.le.s32.totalorder 1, %s23
      %p399 = scmp.lt.s32.totalorder %s23, 3
      %p400 = pnand %p398, %p399
      %p401 = pneg %p400
      // Predicated region
      $region69: #{tpu_custom_call.1} parent=5 // pred_check
        _
      $region70: #{tpu_custom_call.1} parent=5 // pred_check_branch
        %403 = sbr.rel (%p400) target = $region72
      $region71: #{tpu_custom_call.1} parent=5 // pred_region
        %s404 = ssub.s32 %s23, 1
        // Predicated region
        $region73: #{tpu_custom_call.1} parent=71 // pred_check
          %p405 = pneg %p70
        $region74: #{tpu_custom_call.1} parent=71 // pred_check_branch
          %407 = sbr.rel (%p405) target = $region76
        $region75: #{tpu_custom_call.1} parent=71 // pred_region
          %408 = dma.done [#allocation3], 16
        $region76: #{tpu_custom_call.1} parent=71 // pred_fallthru
          _
        %p409 = scmp.lt.s32.totalorder %s28, 1
        %s410 = scalar_select %p409, %s28, 1
        %s411 = smul.addr %s410, 2
        %s412 = smul.addr %s411, 8
        %s413 = scalar_lea.vmem %s0, %s412
        %p414 = pneg %p49
        %p415 = pneg %p46
        %p416 = pneg %p70
        %p417 = pneg %p67
        %p418 = pneg %p91
        %p419 = pneg %p88
        %p420 = pneg %p112
        %p421 = pneg %p109
        %p422 = pneg %p133
        %p423 = pneg %p130
        %p424 = pneg %p154
        %p425 = pneg %p151
        %p426 = pneg %p175
        %p427 = pneg %p172
        %p428 = pneg %p196
        %p429 = pneg %p193
        %p430 = pneg %p217
        %p431 = pneg %p214
        %p432 = pneg %p238
        %p433 = pneg %p235
        %p434 = pneg %p259
        %p435 = pneg %p256
        %p436 = pneg %p280
        %p437 = pneg %p277
        %p438 = pneg %p301
        %p439 = pneg %p298
        %p440 = pneg %p327
        %p441 = pneg %p324
        %s442 = sand.u32 %s314, 1
        %s443 = scalar_lea.sflag [#allocation4], %s442
        %s444 = sand.u32 %s314, 1
        %s445 = smul.addr %s444, 16
        %s446 = scalar_lea.vmem [#allocation5], %s445
        %p447 = scmp.lt.s32.totalorder %s28, 1
        %s448 = scalar_select %p447, %s28, 1
        %s449 = smul.addr %s448, 2
        %s450 = smul.addr %s449, 8
        %s451 = scalar_lea.vmem %s0, %s450
        %v453 = vld [vmem:[%s451] sm:$0xff]
        %v454 = vld [vmem:[%s451 + $0x8] sm:$0xff]
        %v455 = vld [vmem:[#allocation2] sm:$0x1]
        %v456 = vpack.c.bf16 %v453, %v453
        %v457 = vpack.c.bf16 %v454, %v454
        %vm458 = vcmask 64512
        %v460 = vsel %vm458, %v455, 0
        %vm462 = vcmask 1043456
        %v464 = vsel %vm462, %v456, 0
        %v467 = vsel %vm462, %v457, 0
        %469 = vmatprep.subr.bf16.mxu0 %v467
        %470 = vmatpush1.bf16.msra.mxu0 %v464
        %471 = vmatprep.subr.bf16.mxu0 0
        %472 = vmatpush1.bf16.msra.mxu0 0
        %473 = vmatprep.subr.bf16.mxu0 0
        %474 = vmatpush1.bf16.msra.mxu0 0
        %475 = vmatprep.subr.bf16.mxu0 0
        %476 = vmatpush1.bf16.msra.mxu0 0
        %477 = vmatprep.subr.bf16.mxu0 0
        %478 = vmatpush1.bf16.msra.mxu0 0
        %479 = vmatprep.subr.bf16.mxu0 0
        %480 = vmatpush1.bf16.msra.mxu0 0
        %481 = vmatprep.subr.bf16.mxu0 0
        %482 = vmatpush1.bf16.msra.mxu0 0
        %483 = vmatprep.subr.bf16.mxu0 0
        %484 = vmatpush1.bf16.msra.mxu0 0
        %485 = vmatprep.subr.bf16.mxu0 0
        %486 = vmatpush1.bf16.msra.mxu0 0
        %487 = vmatprep.subr.bf16.mxu0 0
        %488 = vmatpush1.bf16.msra.mxu0 0
        %489 = vmatprep.subr.bf16.mxu0 0
        %490 = vmatpush1.bf16.msra.mxu0 0
        %491 = vmatprep.subr.bf16.mxu0 0
        %492 = vmatpush1.bf16.msra.mxu0 0
        %493 = vmatprep.subr.bf16.mxu0 0
        %494 = vmatpush1.bf16.msra.mxu0 0
        %495 = vmatprep.subr.bf16.mxu0 0
        %496 = vmatpush1.bf16.msra.mxu0 0
        %497 = vmatprep.subr.bf16.mxu0 0
        %498 = vmatpush1.bf16.msra.mxu0 0
        %499 = vmatprep.subr.bf16.mxu0 0
        %500 = vmatpush1.bf16.msra.mxu0 0
        %501 = vmatprep.mubr.bf16.mxu0 0
        %502 = vmatmul.mubr.bf16.gmra.mrb[0].mxu0 %v460
        %v503 = vpop.f32.mrb[0].mxu0
        %v504 = vadd.f32 0.0, %v503
        %v505 = vpop.f32.mrb[0].mxu0
        %v506 = vadd.f32 0.0, %v505
        %v507 = vpop.f32.mrb[0].mxu0
        %v508 = vpop.f32.mrb[0].mxu0
        %509 = vdwg.mxu0
        %v510 = vld [vmem:[%s3] sm:$0x3]
        %512 = vset.pattern.permute.xlu0 0
        %513 = vperm.xlu0 %512, %v510
        %v514 = vpop.permute.xlu0 %513
        %v516 = vmul.f32 %v504, %v514
        %v517 = vmul.f32 %v506, %v514
        %v518 = vld [vmem:[%s4] sm:$0x3]
        %520 = vset.pattern.permute.xlu0 0
        %521 = vperm.xlu0 %520, %v518
        %v522 = vpop.permute.xlu0 %521
        %v524 = vadd.f32 %v516, %v522
        %v525 = vadd.f32 %v517, %v522
        %v526 = vsub.f32 0.0, %v524
        %v527 = vsub.f32 0.0, %v525
        %v528 = vmin.f32 %v526, 80.0
        %v529 = vmin.f32 %v527, 80.0
        %v530 = vmul.f32 %v528, 1.442695
        %v531 = vpow.pop %v530
        %v532 = vmul.f32 %v529, 1.442695
        %v533 = vpow.pop %v532
        %v534 = vadd.f32 %v531, 1.0
        %v535 = vadd.f32 %v533, 1.0
        %v536 = vrcp.pop %v534
        %v537 = vrcp.pop %v535
        %v538 = vmul.f32 %v534, %v536
        %v539 = vmul.f32 %v535, %v537
        %v540 = vsub.f32 2.0, %v538
        %v541 = vsub.f32 2.0, %v539
        %v542 = vmul.f32 %v536, %v540
        %v543 = vmul.f32 %v537, %v541
        %v544 = vmul.f32 %v524, %v542
        %v545 = vmul.f32 %v525, %v543
        %v546 = vld [vmem:[%s2] sm:$0x3]
        %v547 = vld [vmem:[%s5] sm:$0x3]
        %v548 = vld [vmem:[%s6] sm:$0x3]
        %551 = vrot.lane.b32.xlu0 %v544, 34
        %v552 = vpop.permute.xlu0 %551
        %553 = vrot.lane.b32.xlu0 %v545, 34
        %v554 = vpop.permute.xlu0 %553
        %vm555 = vcmask 277504
        %v556 = vsel %vm555, %v552, %v554
        %v560 = vsel %vm555, 0.0, %v552
        %v561 = vsel %vm555, %v554, 0.0
        %v562 = vlaneseq
        %v563 = vand.u32 %v562, 127
        %v564 = vadd.s32 %v563, 128
        %vm565 = vcmp.lt.s32.totalorder %v563, 0
        %v566 = vsub.s32 0, %v563
        %v567 = vsel %vm565, %v566, %v563
        %v568 = vshrl.u32 %v567, 4
        %v569 = vand.u32 %v567, 15
        %v570 = vsub.s32 0, %v569
        %v571 = vsel %vm565, %v570, %v569
        %vm572 = vcmp.lt.s32.totalorder %v564, 0
        %v573 = vsub.s32 0, %v564
        %v574 = vsel %vm572, %v573, %v564
        %v575 = vshrl.u32 %v574, 4
        %v576 = vand.u32 %v574, 15
        %v577 = vsub.s32 0, %v576
        %v578 = vsel %vm572, %v577, %v576
        %vm579 = vcmp.ne.s32.totalorder %v571, 0
        %vm580 = vcmp.ne.s32.totalorder %v578, 0
        %vm581 = vcmp.lt.s32.totalorder %v571, 0
        %vm582 = vcmp.lt.s32.totalorder %v578, 0
        %vm583 = vmand %vm581, %vm579
        %vm584 = vmand %vm582, %vm580
        %v585 = vadd.s32 %v571, 16
        %v586 = vadd.s32 %v578, 16
        %v587 = vsel %vm583, %v585, %v571
        %v588 = vsel %vm584, %v586, %v578
        %v589 = vadd.s32 %v587, 4294967294
        %v590 = vadd.s32 %v588, 4294967294
        %vm591 = vcmp.ge.s32.totalorder %v589, 0
        %vm592 = vcmp.ge.s32.totalorder %v590, 0
        %vm593 = vcmp.lt.s32.totalorder %v589, 16
        %vm594 = vcmp.lt.s32.totalorder %v590, 16
        %vm595 = vmand %vm591, %vm593
        %vm596 = vmand %vm592, %vm594
        %v597 = vadd.s32 %v587, 4294967295
        %v598 = vadd.s32 %v588, 4294967295
        %vm599 = vcmp.ge.s32.totalorder %v597, 0
        %vm600 = vcmp.ge.s32.totalorder %v598, 0
        %vm601 = vcmp.lt.s32.totalorder %v597, 16
        %vm602 = vcmp.lt.s32.totalorder %v598, 16
        %vm603 = vmand %vm599, %vm601
        %vm604 = vmand %vm600, %vm602
        %v605 = vadd.s32 %v587, 1
        %v606 = vadd.s32 %v588, 1
        %vm607 = vcmp.ge.s32.totalorder %v605, 0
        %vm608 = vcmp.ge.s32.totalorder %v606, 0
        %vm609 = vcmp.lt.s32.totalorder %v605, 16
        %vm610 = vcmp.lt.s32.totalorder %v606, 16
        %vm611 = vmand %vm607, %vm609
        %vm612 = vmand %vm608, %vm610
        %v613 = vadd.s32 %v587, 2
        %v614 = vadd.s32 %v588, 2
        %vm615 = vcmp.ge.s32.totalorder %v613, 0
        %vm616 = vcmp.ge.s32.totalorder %v614, 0
        %vm617 = vcmp.lt.s32.totalorder %v613, 16
        %vm618 = vcmp.lt.s32.totalorder %v614, 16
        %vm619 = vmand %vm615, %vm617
        %vm620 = vmand %vm616, %vm618
        %v621 = vsel %vm595, %v560, 0.0
        %v622 = vsel %vm596, %v556, 0.0
        %624 = vset.pattern.permute.xlu0 0
        %625 = vperm.xlu0 %624, %v546
        %v626 = vpop.permute.xlu0 %625
        %v628 = vmul.f32 %v626, %v621
        %v629 = vmul.f32 %v626, %v622
        %632 = vrot.lane.b32.xlu0 %v560, 127
        %v633 = vpop.permute.xlu0 %632
        %634 = vrot.lane.b32.xlu0 %v556, 127
        %v635 = vpop.permute.xlu0 %634
        %636 = vrot.lane.b32.xlu0 %v561, 127
        %v637 = vpop.permute.xlu0 %636
        %vm638 = vcmask 1039360
        %v639 = vsel %vm638, %v633, %v635
        %v640 = vsel %vm638, %v635, %v637
        %v643 = vsel %vm603, %v639, 0.0
        %v644 = vsel %vm604, %v640, 0.0
        %645 = vset.pattern.permute.xlu0 1
        %646 = vperm.xlu0 %645, %v546
        %v647 = vpop.permute.xlu0 %646
        %v649 = vmul.f32 %v647, %v643
        %v650 = vmul.f32 %v647, %v644
        %v651 = vadd.f32 %v628, %v649
        %v652 = vadd.f32 %v629, %v650
        %653 = vset.pattern.permute.xlu0 2
        %654 = vperm.xlu0 %653, %v546
        %v655 = vpop.permute.xlu0 %654
        %v657 = vmul.f32 %v655, %v560
        %v658 = vmul.f32 %v655, %v556
        %v659 = vmul.f32 %v655, %v561
        %663 = vrot.lane.b32.xlu0 %v657, 126
        %v664 = vpop.permute.xlu0 %663
        %665 = vrot.lane.b32.xlu0 %v658, 126
        %v666 = vpop.permute.xlu0 %665
        %667 = vrot.lane.b32.xlu0 %v659, 126
        %v668 = vpop.permute.xlu0 %667
        %vm669 = vcmask 1031168
        %v670 = vsel %vm669, %v664, %v666
        %v671 = vsel %vm669, %v666, %v668
        %v674 = vadd.f32 %v651, %v670
        %v675 = vadd.f32 %v652, %v671
        %676 = vrot.lane.b32.xlu0 %v560, 125
        %v677 = vpop.permute.xlu0 %676
        %678 = vrot.lane.b32.xlu0 %v556, 125
        %v679 = vpop.permute.xlu0 %678
        %680 = vrot.lane.b32.xlu0 %v561, 125
        %v681 = vpop.permute.xlu0 %680
        %vm682 = vcmask 1022976
        %v683 = vsel %vm682, %v677, %v679
        %v684 = vsel %vm682, %v679, %v681
        %v687 = vsel %vm611, %v683, 0.0
        %v688 = vsel %vm612, %v684, 0.0
        %689 = vset.pattern.permute.xlu0 3
        %690 = vperm.xlu0 %689, %v546
        %v691 = vpop.permute.xlu0 %690
        %v693 = vmul.f32 %v691, %v687
        %v694 = vmul.f32 %v691, %v688
        %v695 = vadd.f32 %v674, %v693
        %v696 = vadd.f32 %v675, %v694
        %697 = vrot.lane.b32.xlu0 %v560, 124
        %v698 = vpop.permute.xlu0 %697
        %699 = vrot.lane.b32.xlu0 %v556, 124
        %v700 = vpop.permute.xlu0 %699
        %701 = vrot.lane.b32.xlu0 %v561, 124
        %v702 = vpop.permute.xlu0 %701
        %vm703 = vcmask 1014784
        %v704 = vsel %vm703, %v698, %v700
        %v705 = vsel %vm703, %v700, %v702
        %v708 = vsel %vm619, %v704, 0.0
        %v709 = vsel %vm620, %v705, 0.0
        %710 = vset.pattern.permute.xlu0 4
        %711 = vperm.xlu0 %710, %v546
        %v712 = vpop.permute.xlu0 %711
        %v714 = vmul.f32 %v712, %v708
        %v715 = vmul.f32 %v712, %v709
        %v716 = vadd.f32 %v695, %v714
        %v717 = vadd.f32 %v696, %v715
        %718 = vrot.lane.b32.xlu0 %v560, 112
        %v719 = vpop.permute.xlu0 %718
        %720 = vrot.lane.b32.xlu0 %v556, 112
        %v721 = vpop.permute.xlu0 %720
        %722 = vrot.lane.b32.xlu0 %v561, 112
        %v723 = vpop.permute.xlu0 %722
        %vm724 = vcmask 916480
        %v725 = vsel %vm724, %v719, %v721
        %v726 = vsel %vm724, %v721, %v723
        %v729 = vsel %vm595, %v725, 0.0
        %v730 = vsel %vm596, %v726, 0.0
        %731 = vset.pattern.permute.xlu0 5
        %732 = vperm.xlu0 %731, %v546
        %v733 = vpop.permute.xlu0 %732
        %v735 = vmul.f32 %v733, %v729
        %v736 = vmul.f32 %v733, %v730
        %v737 = vadd.f32 %v716, %v735
        %v738 = vadd.f32 %v717, %v736
        %739 = vrot.lane.b32.xlu0 %v560, 111
        %v740 = vpop.permute.xlu0 %739
        %741 = vrot.lane.b32.xlu0 %v556, 111
        %v742 = vpop.permute.xlu0 %741
        %743 = vrot.lane.b32.xlu0 %v561, 111
        %v744 = vpop.permute.xlu0 %743
        %vm745 = vcmask 908288
        %v746 = vsel %vm745, %v740, %v742
        %v747 = vsel %vm745, %v742, %v744
        %v750 = vsel %vm603, %v746, 0.0
        %v751 = vsel %vm604, %v747, 0.0
        %752 = vset.pattern.permute.xlu0 6
        %753 = vperm.xlu0 %752, %v546
        %v754 = vpop.permute.xlu0 %753
        %v756 = vmul.f32 %v754, %v750
        %v757 = vmul.f32 %v754, %v751
        %v758 = vadd.f32 %v737, %v756
        %v759 = vadd.f32 %v738, %v757
        %760 = vset.pattern.permute.xlu0 7
        %761 = vperm.xlu0 %760, %v546
        %v762 = vpop.permute.xlu0 %761
        %v764 = vmul.f32 %v762, %v560
        %v765 = vmul.f32 %v762, %v556
        %v766 = vmul.f32 %v762, %v561
        %770 = vrot.lane.b32.xlu0 %v764, 110
        %v771 = vpop.permute.xlu0 %770
        %772 = vrot.lane.b32.xlu0 %v765, 110
        %v773 = vpop.permute.xlu0 %772
        %774 = vrot.lane.b32.xlu0 %v766, 110
        %v775 = vpop.permute.xlu0 %774
        %vm776 = vcmask 900096
        %v777 = vsel %vm776, %v771, %v773
        %v778 = vsel %vm776, %v773, %v775
        %v781 = vadd.f32 %v758, %v777
        %v782 = vadd.f32 %v759, %v778
        %783 = vrot.lane.b32.xlu0 %v560, 109
        %v784 = vpop.permute.xlu0 %783
        %785 = vrot.lane.b32.xlu0 %v556, 109
        %v786 = vpop.permute.xlu0 %785
        %787 = vrot.lane.b32.xlu0 %v561, 109
        %v788 = vpop.permute.xlu0 %787
        %vm789 = vcmask 891904
        %v790 = vsel %vm789, %v784, %v786
        %v791 = vsel %vm789, %v786, %v788
        %v794 = vsel %vm611, %v790, 0.0
        %v795 = vsel %vm612, %v791, 0.0
        %796 = vset.pattern.permute.xlu0 8
        %797 = vperm.xlu0 %796, %v546
        %v798 = vpop.permute.xlu0 %797
        %v800 = vmul.f32 %v798, %v794
        %v801 = vmul.f32 %v798, %v795
        %v802 = vadd.f32 %v781, %v800
        %v803 = vadd.f32 %v782, %v801
        %804 = vrot.lane.b32.xlu0 %v560, 108
        %v805 = vpop.permute.xlu0 %804
        %806 = vrot.lane.b32.xlu0 %v556, 108
        %v807 = vpop.permute.xlu0 %806
        %808 = vrot.lane.b32.xlu0 %v561, 108
        %v809 = vpop.permute.xlu0 %808
        %vm810 = vcmask 883712
        %v811 = vsel %vm810, %v805, %v807
        %v812 = vsel %vm810, %v807, %v809
        %v815 = vsel %vm619, %v811, 0.0
        %v816 = vsel %vm620, %v812, 0.0
        %817 = vset.pattern.permute.xlu0 9
        %818 = vperm.xlu0 %817, %v546
        %v819 = vpop.permute.xlu0 %818
        %v821 = vmul.f32 %v819, %v815
        %v822 = vmul.f32 %v819, %v816
        %v823 = vadd.f32 %v802, %v821
        %v824 = vadd.f32 %v803, %v822
        %825 = vrot.lane.b32.xlu0 %v560, 96
        %v826 = vpop.permute.xlu0 %825
        %827 = vrot.lane.b32.xlu0 %v556, 96
        %v828 = vpop.permute.xlu0 %827
        %829 = vrot.lane.b32.xlu0 %v561, 96
        %v830 = vpop.permute.xlu0 %829
        %vm831 = vcmask 785408
        %v832 = vsel %vm831, %v826, %v828
        %v833 = vsel %vm831, %v828, %v830
        %v836 = vsel %vm595, %v832, 0.0
        %v837 = vsel %vm596, %v833, 0.0
        %838 = vset.pattern.permute.xlu0 10
        %839 = vperm.xlu0 %838, %v546
        %v840 = vpop.permute.xlu0 %839
        %v842 = vmul.f32 %v840, %v836
        %v843 = vmul.f32 %v840, %v837
        %v844 = vadd.f32 %v823, %v842
        %v845 = vadd.f32 %v824, %v843
        %846 = vrot.lane.b32.xlu0 %v560, 95
        %v847 = vpop.permute.xlu0 %846
        %848 = vrot.lane.b32.xlu0 %v556, 95
        %v849 = vpop.permute.xlu0 %848
        %850 = vrot.lane.b32.xlu0 %v561, 95
        %v851 = vpop.permute.xlu0 %850
        %vm852 = vcmask 777216
        %v853 = vsel %vm852, %v847, %v849
        %v854 = vsel %vm852, %v849, %v851
        %v857 = vsel %vm603, %v853, 0.0
        %v858 = vsel %vm604, %v854, 0.0
        %859 = vset.pattern.permute.xlu0 11
        %860 = vperm.xlu0 %859, %v546
        %v861 = vpop.permute.xlu0 %860
        %v863 = vmul.f32 %v861, %v857
        %v864 = vmul.f32 %v861, %v858
        %v865 = vadd.f32 %v844, %v863
        %v866 = vadd.f32 %v845, %v864
        %867 = vset.pattern.permute.xlu0 12
        %868 = vperm.xlu0 %867, %v546
        %v869 = vpop.permute.xlu0 %868
        %v871 = vmul.f32 %v869, %v560
        %v872 = vmul.f32 %v869, %v556
        %v873 = vmul.f32 %v869, %v561
        %877 = vrot.lane.b32.xlu0 %v871, 94
        %v878 = vpop.permute.xlu0 %877
        %879 = vrot.lane.b32.xlu0 %v872, 94
        %v880 = vpop.permute.xlu0 %879
        %881 = vrot.lane.b32.xlu0 %v873, 94
        %v882 = vpop.permute.xlu0 %881
        %vm883 = vcmask 769024
        %v884 = vsel %vm883, %v878, %v880
        %v885 = vsel %vm883, %v880, %v882
        %v888 = vadd.f32 %v865, %v884
        %v889 = vadd.f32 %v866, %v885
        %890 = vrot.lane.b32.xlu0 %v560, 93
        %v891 = vpop.permute.xlu0 %890
        %892 = vrot.lane.b32.xlu0 %v556, 93
        %v893 = vpop.permute.xlu0 %892
        %894 = vrot.lane.b32.xlu0 %v561, 93
        %v895 = vpop.permute.xlu0 %894
        %vm896 = vcmask 760832
        %v897 = vsel %vm896, %v891, %v893
        %v898 = vsel %vm896, %v893, %v895
        %v901 = vsel %vm611, %v897, 0.0
        %v902 = vsel %vm612, %v898, 0.0
        %903 = vset.pattern.permute.xlu0 13
        %904 = vperm.xlu0 %903, %v546
        %v905 = vpop.permute.xlu0 %904
        %v907 = vmul.f32 %v905, %v901
        %v908 = vmul.f32 %v905, %v902
        %v909 = vadd.f32 %v888, %v907
        %v910 = vadd.f32 %v889, %v908
        %911 = vrot.lane.b32.xlu0 %v560, 92
        %v912 = vpop.permute.xlu0 %911
        %913 = vrot.lane.b32.xlu0 %v556, 92
        %v914 = vpop.permute.xlu0 %913
        %915 = vrot.lane.b32.xlu0 %v561, 92
        %v916 = vpop.permute.xlu0 %915
        %vm917 = vcmask 752640
        %v918 = vsel %vm917, %v912, %v914
        %v919 = vsel %vm917, %v914, %v916
        %v922 = vsel %vm619, %v918, 0.0
        %v923 = vsel %vm620, %v919, 0.0
        %924 = vset.pattern.permute.xlu0 14
        %925 = vperm.xlu0 %924, %v546
        %v926 = vpop.permute.xlu0 %925
        %v928 = vmul.f32 %v926, %v922
        %v929 = vmul.f32 %v926, %v923
        %v930 = vadd.f32 %v909, %v928
        %v931 = vadd.f32 %v910, %v929
        %932 = vrot.lane.b32.xlu0 %v560, 80
        %v933 = vpop.permute.xlu0 %932
        %934 = vrot.lane.b32.xlu0 %v556, 80
        %v935 = vpop.permute.xlu0 %934
        %936 = vrot.lane.b32.xlu0 %v561, 80
        %v937 = vpop.permute.xlu0 %936
        %vm938 = vcmask 654336
        %v939 = vsel %vm938, %v933, %v935
        %v940 = vsel %vm938, %v935, %v937
        %v943 = vsel %vm595, %v939, 0.0
        %v944 = vsel %vm596, %v940, 0.0
        %945 = vset.pattern.permute.xlu0 15
        %946 = vperm.xlu0 %945, %v546
        %v947 = vpop.permute.xlu0 %946
        %v949 = vmul.f32 %v947, %v943
        %v950 = vmul.f32 %v947, %v944
        %v951 = vadd.f32 %v930, %v949
        %v952 = vadd.f32 %v931, %v950
        %953 = vrot.lane.b32.xlu0 %v560, 79
        %v954 = vpop.permute.xlu0 %953
        %955 = vrot.lane.b32.xlu0 %v556, 79
        %v956 = vpop.permute.xlu0 %955
        %957 = vrot.lane.b32.xlu0 %v561, 79
        %v958 = vpop.permute.xlu0 %957
        %vm959 = vcmask 646144
        %v960 = vsel %vm959, %v954, %v956
        %v961 = vsel %vm959, %v956, %v958
        %v964 = vsel %vm603, %v960, 0.0
        %v965 = vsel %vm604, %v961, 0.0
        %966 = vset.pattern.permute.xlu0 16
        %967 = vperm.xlu0 %966, %v546
        %v968 = vpop.permute.xlu0 %967
        %v970 = vmul.f32 %v968, %v964
        %v971 = vmul.f32 %v968, %v965
        %v972 = vadd.f32 %v951, %v970
        %v973 = vadd.f32 %v952, %v971
        %974 = vset.pattern.permute.xlu0 17
        %975 = vperm.xlu0 %974, %v546
        %v976 = vpop.permute.xlu0 %975
        %v978 = vmul.f32 %v976, %v560
        %v979 = vmul.f32 %v976, %v556
        %v980 = vmul.f32 %v976, %v561
        %984 = vrot.lane.b32.xlu0 %v978, 78
        %v985 = vpop.permute.xlu0 %984
        %986 = vrot.lane.b32.xlu0 %v979, 78
        %v987 = vpop.permute.xlu0 %986
        %988 = vrot.lane.b32.xlu0 %v980, 78
        %v989 = vpop.permute.xlu0 %988
        %vm990 = vcmask 637952
        %v991 = vsel %vm990, %v985, %v987
        %v992 = vsel %vm990, %v987, %v989
        %v995 = vadd.f32 %v972, %v991
        %v996 = vadd.f32 %v973, %v992
        %997 = vrot.lane.b32.xlu0 %v560, 77
        %v998 = vpop.permute.xlu0 %997
        %999 = vrot.lane.b32.xlu0 %v556, 77
        %v1000 = vpop.permute.xlu0 %999
        %1001 = vrot.lane.b32.xlu0 %v561, 77
        %v1002 = vpop.permute.xlu0 %1001
        %vm1003 = vcmask 629760
        %v1004 = vsel %vm1003, %v998, %v1000
        %v1005 = vsel %vm1003, %v1000, %v1002
        %v1008 = vsel %vm611, %v1004, 0.0
        %v1009 = vsel %vm612, %v1005, 0.0
        %1010 = vset.pattern.permute.xlu0 18
        %1011 = vperm.xlu0 %1010, %v546
        %v1012 = vpop.permute.xlu0 %1011
        %v1014 = vmul.f32 %v1012, %v1008
        %v1015 = vmul.f32 %v1012, %v1009
        %v1016 = vadd.f32 %v995, %v1014
        %v1017 = vadd.f32 %v996, %v1015
        %1018 = vrot.lane.b32.xlu0 %v560, 76
        %v1019 = vpop.permute.xlu0 %1018
        %1020 = vrot.lane.b32.xlu0 %v556, 76
        %v1021 = vpop.permute.xlu0 %1020
        %1022 = vrot.lane.b32.xlu0 %v561, 76
        %v1023 = vpop.permute.xlu0 %1022
        %vm1024 = vcmask 621568
        %v1025 = vsel %vm1024, %v1019, %v1021
        %v1026 = vsel %vm1024, %v1021, %v1023
        %v1029 = vsel %vm619, %v1025, 0.0
        %v1030 = vsel %vm620, %v1026, 0.0
        %1031 = vset.pattern.permute.xlu0 19
        %1032 = vperm.xlu0 %1031, %v546
        %v1033 = vpop.permute.xlu0 %1032
        %v1035 = vmul.f32 %v1033, %v1029
        %v1036 = vmul.f32 %v1033, %v1030
        %v1037 = vadd.f32 %v1016, %v1035
        %v1038 = vadd.f32 %v1017, %v1036
        %1039 = vrot.lane.b32.xlu0 %v560, 64
        %v1040 = vpop.permute.xlu0 %1039
        %1041 = vrot.lane.b32.xlu0 %v556, 64
        %v1042 = vpop.permute.xlu0 %1041
        %1043 = vrot.lane.b32.xlu0 %v561, 64
        %v1044 = vpop.permute.xlu0 %1043
        %vm1045 = vcmask 523264
        %v1046 = vsel %vm1045, %v1040, %v1042
        %v1047 = vsel %vm1045, %v1042, %v1044
        %v1050 = vsel %vm595, %v1046, 0.0
        %v1051 = vsel %vm596, %v1047, 0.0
        %1052 = vset.pattern.permute.xlu0 20
        %1053 = vperm.xlu0 %1052, %v546
        %v1054 = vpop.permute.xlu0 %1053
        %v1056 = vmul.f32 %v1054, %v1050
        %v1057 = vmul.f32 %v1054, %v1051
        %v1058 = vadd.f32 %v1037, %v1056
        %v1059 = vadd.f32 %v1038, %v1057
        %1060 = vrot.lane.b32.xlu0 %v560, 63
        %v1061 = vpop.permute.xlu0 %1060
        %1062 = vrot.lane.b32.xlu0 %v556, 63
        %v1063 = vpop.permute.xlu0 %1062
        %1064 = vrot.lane.b32.xlu0 %v561, 63
        %v1065 = vpop.permute.xlu0 %1064
        %vm1066 = vcmask 515072
        %v1067 = vsel %vm1066, %v1061, %v1063
        %v1068 = vsel %vm1066, %v1063, %v1065
        %v1071 = vsel %vm603, %v1067, 0.0
        %v1072 = vsel %vm604, %v1068, 0.0
        %1073 = vset.pattern.permute.xlu0 21
        %1074 = vperm.xlu0 %1073, %v546
        %v1075 = vpop.permute.xlu0 %1074
        %v1077 = vmul.f32 %v1075, %v1071
        %v1078 = vmul.f32 %v1075, %v1072
        %v1079 = vadd.f32 %v1058, %v1077
        %v1080 = vadd.f32 %v1059, %v1078
        %1081 = vset.pattern.permute.xlu0 22
        %1082 = vperm.xlu0 %1081, %v546
        %v1083 = vpop.permute.xlu0 %1082
        %v1085 = vmul.f32 %v1083, %v560
        %v1086 = vmul.f32 %v1083, %v556
        %v1087 = vmul.f32 %v1083, %v561
        %1091 = vrot.lane.b32.xlu0 %v1085, 62
        %v1092 = vpop.permute.xlu0 %1091
        %1093 = vrot.lane.b32.xlu0 %v1086, 62
        %v1094 = vpop.permute.xlu0 %1093
        %1095 = vrot.lane.b32.xlu0 %v1087, 62
        %v1096 = vpop.permute.xlu0 %1095
        %vm1097 = vcmask 506880
        %v1098 = vsel %vm1097, %v1092, %v1094
        %v1099 = vsel %vm1097, %v1094, %v1096
        %v1102 = vadd.f32 %v1079, %v1098
        %v1103 = vadd.f32 %v1080, %v1099
        %1104 = vrot.lane.b32.xlu0 %v560, 61
        %v1105 = vpop.permute.xlu0 %1104
        %1106 = vrot.lane.b32.xlu0 %v556, 61
        %v1107 = vpop.permute.xlu0 %1106
        %1108 = vrot.lane.b32.xlu0 %v561, 61
        %v1109 = vpop.permute.xlu0 %1108
        %vm1110 = vcmask 498688
        %v1111 = vsel %vm1110, %v1105, %v1107
        %v1112 = vsel %vm1110, %v1107, %v1109
        %v1115 = vsel %vm611, %v1111, 0.0
        %v1116 = vsel %vm612, %v1112, 0.0
        %1117 = vset.pattern.permute.xlu0 23
        %1118 = vperm.xlu0 %1117, %v546
        %v1119 = vpop.permute.xlu0 %1118
        %v1121 = vmul.f32 %v1119, %v1115
        %v1122 = vmul.f32 %v1119, %v1116
        %v1123 = vadd.f32 %v1102, %v1121
        %v1124 = vadd.f32 %v1103, %v1122
        %1125 = vrot.lane.b32.xlu0 %v560, 60
        %v1126 = vpop.permute.xlu0 %1125
        %1127 = vrot.lane.b32.xlu0 %v556, 60
        %v1128 = vpop.permute.xlu0 %1127
        %1129 = vrot.lane.b32.xlu0 %v561, 60
        %v1130 = vpop.permute.xlu0 %1129
        %vm1131 = vcmask 490496
        %v1132 = vsel %vm1131, %v1126, %v1128
        %v1133 = vsel %vm1131, %v1128, %v1130
        %v1136 = vsel %vm619, %v1132, 0.0
        %v1137 = vsel %vm620, %v1133, 0.0
        %1138 = vset.pattern.permute.xlu0 24
        %1139 = vperm.xlu0 %1138, %v546
        %v1140 = vpop.permute.xlu0 %1139
        %v1142 = vmul.f32 %v1140, %v1136
        %v1143 = vmul.f32 %v1140, %v1137
        %v1144 = vadd.f32 %v1123, %v1142
        %v1145 = vadd.f32 %v1124, %v1143
        %1147 = vset.pattern.permute.xlu0 0
        %1148 = vperm.xlu0 %1147, %v547
        %v1149 = vpop.permute.xlu0 %1148
        %v1151 = vmul.f32 %v1144, %v1149
        %v1152 = vmul.f32 %v1145, %v1149
        %1154 = vset.pattern.permute.xlu0 0
        %1155 = vperm.xlu0 %1154, %v548
        %v1156 = vpop.permute.xlu0 %1155
        %v1158 = vadd.f32 %v1151, %v1156
        %v1159 = vadd.f32 %v1152, %v1156
        %v1160 = vsub.f32 0.0, %v1158
        %v1161 = vsub.f32 0.0, %v1159
        %v1162 = vmin.f32 %v1160, 80.0
        %v1163 = vmin.f32 %v1161, 80.0
        %v1164 = vmul.f32 %v1162, 1.442695
        %v1165 = vpow.pop %v1164
        %v1166 = vmul.f32 %v1163, 1.442695
        %v1167 = vpow.pop %v1166
        %v1168 = vadd.f32 %v1165, 1.0
        %v1169 = vadd.f32 %v1167, 1.0
        %v1170 = vrcp.pop %v1168
        %v1171 = vrcp.pop %v1169
        %v1172 = vmul.f32 %v1168, %v1170
        %v1173 = vmul.f32 %v1169, %v1171
        %v1174 = vsub.f32 2.0, %v1172
        %v1175 = vsub.f32 2.0, %v1173
        %v1176 = vmul.f32 %v1170, %v1174
        %v1177 = vmul.f32 %v1171, %v1175
        %v1178 = vmul.f32 %v1158, %v1176
        %v1179 = vmul.f32 %v1159, %v1177
        %v1182 = vrot.slane %v1178, 6
        %v1183 = vrot.slane %v1179, 6
        %vm1186 = vcmask 1041408
        %v1187 = vsel %vm1186, %v544, %v1182
        %v1188 = vsel %vm1186, %v545, %v1183
        %v1189 = vld [vmem:[%s7] sm:$0x3]
        %v1190 = vpack.c.bf16 %v1187, %v1187
        %v1191 = vpack.c.bf16 %v1188, %v1188
        %vm1192 = vcmask 31744
        %v1194 = vsel %vm1192, %v1189, 0
        %v1197 = vsel %vm1186, %v1190, 0
        %v1200 = vsel %vm1186, %v1191, 0
        %1202 = vmatprep.subr.bf16.mxu0 %v1200
        %1203 = vmatpush1.bf16.msra.mxu0 %v1197
        %1204 = vmatprep.subr.bf16.mxu0 0
        %1205 = vmatpush1.bf16.msra.mxu0 0
        %1206 = vmatprep.subr.bf16.mxu0 0
        %1207 = vmatpush1.bf16.msra.mxu0 0
        %1208 = vmatprep.subr.bf16.mxu0 0
        %1209 = vmatpush1.bf16.msra.mxu0 0
        %1210 = vmatprep.subr.bf16.mxu0 0
        %1211 = vmatpush1.bf16.msra.mxu0 0
        %1212 = vmatprep.subr.bf16.mxu0 0
        %1213 = vmatpush1.bf16.msra.mxu0 0
        %1214 = vmatprep.subr.bf16.mxu0 0
        %1215 = vmatpush1.bf16.msra.mxu0 0
        %1216 = vmatprep.subr.bf16.mxu0 0
        %1217 = vmatpush1.bf16.msra.mxu0 0
        %1218 = vmatprep.subr.bf16.mxu0 0
        %1219 = vmatpush1.bf16.msra.mxu0 0
        %1220 = vmatprep.subr.bf16.mxu0 0
        %1221 = vmatpush1.bf16.msra.mxu0 0
        %1222 = vmatprep.subr.bf16.mxu0 0
        %1223 = vmatpush1.bf16.msra.mxu0 0
        %1224 = vmatprep.subr.bf16.mxu0 0
        %1225 = vmatpush1.bf16.msra.mxu0 0
        %1226 = vmatprep.subr.bf16.mxu0 0
        %1227 = vmatpush1.bf16.msra.mxu0 0
        %1228 = vmatprep.subr.bf16.mxu0 0
        %1229 = vmatpush1.bf16.msra.mxu0 0
        %1230 = vmatprep.subr.bf16.mxu0 0
        %1231 = vmatpush1.bf16.msra.mxu0 0
        %1232 = vmatprep.subr.bf16.mxu0 0
        %1233 = vmatpush1.bf16.msra.mxu0 0
        %1234 = vmatprep.mubr.bf16.mxu0 0
        %1235 = vmatmul.mubr.bf16.gmra.mrb[0].mxu0 %v1194
        %v1236 = vpop.f32.mrb[0].mxu0
        %v1237 = vadd.f32 0.0, %v1236
        %v1238 = vpop.f32.mrb[0].mxu0
        %v1239 = vadd.f32 0.0, %v1238
        %v1240 = vpop.f32.mrb[0].mxu0
        %v1241 = vpop.f32.mrb[0].mxu0
        %1242 = vdwg.mxu0
        %v1243 = vld [vmem:[%s9] sm:$0xf]
        %1245 = vset.pattern.permute.xlu0 0
        %1246 = vperm.xlu0 %1245, %v1243
        %v1247 = vpop.permute.xlu0 %1246
        %v1249 = vmul.f32 %v1237, %v1247
        %v1250 = vmul.f32 %v1239, %v1247
        %v1251 = vld [vmem:[%s10] sm:$0xf]
        %1253 = vset.pattern.permute.xlu0 0
        %1254 = vperm.xlu0 %1253, %v1251
        %v1255 = vpop.permute.xlu0 %1254
        %v1257 = vadd.f32 %v1249, %v1255
        %v1258 = vadd.f32 %v1250, %v1255
        %v1259 = vld [vmem:[%s8] sm:$0xf]
        %v1260 = vld [vmem:[%s11] sm:$0xf]
        %v1261 = vld [vmem:[%s12] sm:$0xf]
        %1264 = vrot.lane.b32.xlu0 %v1257, 34
        %v1265 = vpop.permute.xlu0 %1264
        %1266 = vrot.lane.b32.xlu0 %v1258, 34
        %v1267 = vpop.permute.xlu0 %1266
        %v1268 = vsel %vm555, %v1265, %v1267
        %v1272 = vsel %vm555, 0.0, %v1265
        %v1273 = vsel %vm555, %v1267, 0.0
        %v1274 = vsel %vm595, %v1272, 0.0
        %v1275 = vsel %vm596, %v1268, 0.0
        %1277 = vset.pattern.permute.xlu0 0
        %1278 = vperm.xlu0 %1277, %v1259
        %v1279 = vpop.permute.xlu0 %1278
        %v1281 = vmul.f32 %v1279, %v1274
        %v1282 = vmul.f32 %v1279, %v1275
        %1285 = vrot.lane.b32.xlu0 %v1272, 127
        %v1286 = vpop.permute.xlu0 %1285
        %1287 = vrot.lane.b32.xlu0 %v1268, 127
        %v1288 = vpop.permute.xlu0 %1287
        %1289 = vrot.lane.b32.xlu0 %v1273, 127
        %v1290 = vpop.permute.xlu0 %1289
        %v1291 = vsel %vm638, %v1286, %v1288
        %v1292 = vsel %vm638, %v1288, %v1290
        %v1295 = vsel %vm603, %v1291, 0.0
        %v1296 = vsel %vm604, %v1292, 0.0
        %1297 = vset.pattern.permute.xlu0 1
        %1298 = vperm.xlu0 %1297, %v1259
        %v1299 = vpop.permute.xlu0 %1298
        %v1301 = vmul.f32 %v1299, %v1295
        %v1302 = vmul.f32 %v1299, %v1296
        %v1303 = vadd.f32 %v1281, %v1301
        %v1304 = vadd.f32 %v1282, %v1302
        %1305 = vset.pattern.permute.xlu0 2
        %1306 = vperm.xlu0 %1305, %v1259
        %v1307 = vpop.permute.xlu0 %1306
        %v1309 = vmul.f32 %v1307, %v1272
        %v1310 = vmul.f32 %v1307, %v1268
        %v1311 = vmul.f32 %v1307, %v1273
        %1315 = vrot.lane.b32.xlu0 %v1309, 126
        %v1316 = vpop.permute.xlu0 %1315
        %1317 = vrot.lane.b32.xlu0 %v1310, 126
        %v1318 = vpop.permute.xlu0 %1317
        %1319 = vrot.lane.b32.xlu0 %v1311, 126
        %v1320 = vpop.permute.xlu0 %1319
        %v1321 = vsel %vm669, %v1316, %v1318
        %v1322 = vsel %vm669, %v1318, %v1320
        %v1325 = vadd.f32 %v1303, %v1321
        %v1326 = vadd.f32 %v1304, %v1322
        %1327 = vrot.lane.b32.xlu0 %v1272, 125
        %v1328 = vpop.permute.xlu0 %1327
        %1329 = vrot.lane.b32.xlu0 %v1268, 125
        %v1330 = vpop.permute.xlu0 %1329
        %1331 = vrot.lane.b32.xlu0 %v1273, 125
        %v1332 = vpop.permute.xlu0 %1331
        %v1333 = vsel %vm682, %v1328, %v1330
        %v1334 = vsel %vm682, %v1330, %v1332
        %v1337 = vsel %vm611, %v1333, 0.0
        %v1338 = vsel %vm612, %v1334, 0.0
        %1339 = vset.pattern.permute.xlu0 3
        %1340 = vperm.xlu0 %1339, %v1259
        %v1341 = vpop.permute.xlu0 %1340
        %v1343 = vmul.f32 %v1341, %v1337
        %v1344 = vmul.f32 %v1341, %v1338
        %v1345 = vadd.f32 %v1325, %v1343
        %v1346 = vadd.f32 %v1326, %v1344
        %1347 = vrot.lane.b32.xlu0 %v1272, 124
        %v1348 = vpop.permute.xlu0 %1347
        %1349 = vrot.lane.b32.xlu0 %v1268, 124
        %v1350 = vpop.permute.xlu0 %1349
        %1351 = vrot.lane.b32.xlu0 %v1273, 124
        %v1352 = vpop.permute.xlu0 %1351
        %v1353 = vsel %vm703, %v1348, %v1350
        %v1354 = vsel %vm703, %v1350, %v1352
        %v1357 = vsel %vm619, %v1353, 0.0
        %v1358 = vsel %vm620, %v1354, 0.0
        %1359 = vset.pattern.permute.xlu0 4
        %1360 = vperm.xlu0 %1359, %v1259
        %v1361 = vpop.permute.xlu0 %1360
        %v1363 = vmul.f32 %v1361, %v1357
        %v1364 = vmul.f32 %v1361, %v1358
        %v1365 = vadd.f32 %v1345, %v1363
        %v1366 = vadd.f32 %v1346, %v1364
        %1367 = vrot.lane.b32.xlu0 %v1272, 112
        %v1368 = vpop.permute.xlu0 %1367
        %1369 = vrot.lane.b32.xlu0 %v1268, 112
        %v1370 = vpop.permute.xlu0 %1369
        %1371 = vrot.lane.b32.xlu0 %v1273, 112
        %v1372 = vpop.permute.xlu0 %1371
        %v1373 = vsel %vm724, %v1368, %v1370
        %v1374 = vsel %vm724, %v1370, %v1372
        %v1377 = vsel %vm595, %v1373, 0.0
        %v1378 = vsel %vm596, %v1374, 0.0
        %1379 = vset.pattern.permute.xlu0 5
        %1380 = vperm.xlu0 %1379, %v1259
        %v1381 = vpop.permute.xlu0 %1380
        %v1383 = vmul.f32 %v1381, %v1377
        %v1384 = vmul.f32 %v1381, %v1378
        %v1385 = vadd.f32 %v1365, %v1383
        %v1386 = vadd.f32 %v1366, %v1384
        %1387 = vrot.lane.b32.xlu0 %v1272, 111
        %v1388 = vpop.permute.xlu0 %1387
        %1389 = vrot.lane.b32.xlu0 %v1268, 111
        %v1390 = vpop.permute.xlu0 %1389
        %1391 = vrot.lane.b32.xlu0 %v1273, 111
        %v1392 = vpop.permute.xlu0 %1391
        %v1393 = vsel %vm745, %v1388, %v1390
        %v1394 = vsel %vm745, %v1390, %v1392
        %v1397 = vsel %vm603, %v1393, 0.0
        %v1398 = vsel %vm604, %v1394, 0.0
        %1399 = vset.pattern.permute.xlu0 6
        %1400 = vperm.xlu0 %1399, %v1259
        %v1401 = vpop.permute.xlu0 %1400
        %v1403 = vmul.f32 %v1401, %v1397
        %v1404 = vmul.f32 %v1401, %v1398
        %v1405 = vadd.f32 %v1385, %v1403
        %v1406 = vadd.f32 %v1386, %v1404
        %1407 = vset.pattern.permute.xlu0 7
        %1408 = vperm.xlu0 %1407, %v1259
        %v1409 = vpop.permute.xlu0 %1408
        %v1411 = vmul.f32 %v1409, %v1272
        %v1412 = vmul.f32 %v1409, %v1268
        %v1413 = vmul.f32 %v1409, %v1273
        %1417 = vrot.lane.b32.xlu0 %v1411, 110
        %v1418 = vpop.permute.xlu0 %1417
        %1419 = vrot.lane.b32.xlu0 %v1412, 110
        %v1420 = vpop.permute.xlu0 %1419
        %1421 = vrot.lane.b32.xlu0 %v1413, 110
        %v1422 = vpop.permute.xlu0 %1421
        %v1423 = vsel %vm776, %v1418, %v1420
        %v1424 = vsel %vm776, %v1420, %v1422
        %v1427 = vadd.f32 %v1405, %v1423
        %v1428 = vadd.f32 %v1406, %v1424
        %1429 = vrot.lane.b32.xlu0 %v1272, 109
        %v1430 = vpop.permute.xlu0 %1429
        %1431 = vrot.lane.b32.xlu0 %v1268, 109
        %v1432 = vpop.permute.xlu0 %1431
        %1433 = vrot.lane.b32.xlu0 %v1273, 109
        %v1434 = vpop.permute.xlu0 %1433
        %v1435 = vsel %vm789, %v1430, %v1432
        %v1436 = vsel %vm789, %v1432, %v1434
        %v1439 = vsel %vm611, %v1435, 0.0
        %v1440 = vsel %vm612, %v1436, 0.0
        %1441 = vset.pattern.permute.xlu0 8
        %1442 = vperm.xlu0 %1441, %v1259
        %v1443 = vpop.permute.xlu0 %1442
        %v1445 = vmul.f32 %v1443, %v1439
        %v1446 = vmul.f32 %v1443, %v1440
        %v1447 = vadd.f32 %v1427, %v1445
        %v1448 = vadd.f32 %v1428, %v1446
        %1449 = vrot.lane.b32.xlu0 %v1272, 108
        %v1450 = vpop.permute.xlu0 %1449
        %1451 = vrot.lane.b32.xlu0 %v1268, 108
        %v1452 = vpop.permute.xlu0 %1451
        %1453 = vrot.lane.b32.xlu0 %v1273, 108
        %v1454 = vpop.permute.xlu0 %1453
        %v1455 = vsel %vm810, %v1450, %v1452
        %v1456 = vsel %vm810, %v1452, %v1454
        %v1459 = vsel %vm619, %v1455, 0.0
        %v1460 = vsel %vm620, %v1456, 0.0
        %1461 = vset.pattern.permute.xlu0 9
        %1462 = vperm.xlu0 %1461, %v1259
        %v1463 = vpop.permute.xlu0 %1462
        %v1465 = vmul.f32 %v1463, %v1459
        %v1466 = vmul.f32 %v1463, %v1460
        %v1467 = vadd.f32 %v1447, %v1465
        %v1468 = vadd.f32 %v1448, %v1466
        %1469 = vrot.lane.b32.xlu0 %v1272, 96
        %v1470 = vpop.permute.xlu0 %1469
        %1471 = vrot.lane.b32.xlu0 %v1268, 96
        %v1472 = vpop.permute.xlu0 %1471
        %1473 = vrot.lane.b32.xlu0 %v1273, 96
        %v1474 = vpop.permute.xlu0 %1473
        %v1475 = vsel %vm831, %v1470, %v1472
        %v1476 = vsel %vm831, %v1472, %v1474
        %v1479 = vsel %vm595, %v1475, 0.0
        %v1480 = vsel %vm596, %v1476, 0.0
        %1481 = vset.pattern.permute.xlu0 10
        %1482 = vperm.xlu0 %1481, %v1259
        %v1483 = vpop.permute.xlu0 %1482
        %v1485 = vmul.f32 %v1483, %v1479
        %v1486 = vmul.f32 %v1483, %v1480
        %v1487 = vadd.f32 %v1467, %v1485
        %v1488 = vadd.f32 %v1468, %v1486
        %1489 = vrot.lane.b32.xlu0 %v1272, 95
        %v1490 = vpop.permute.xlu0 %1489
        %1491 = vrot.lane.b32.xlu0 %v1268, 95
        %v1492 = vpop.permute.xlu0 %1491
        %1493 = vrot.lane.b32.xlu0 %v1273, 95
        %v1494 = vpop.permute.xlu0 %1493
        %v1495 = vsel %vm852, %v1490, %v1492
        %v1496 = vsel %vm852, %v1492, %v1494
        %v1499 = vsel %vm603, %v1495, 0.0
        %v1500 = vsel %vm604, %v1496, 0.0
        %1501 = vset.pattern.permute.xlu0 11
        %1502 = vperm.xlu0 %1501, %v1259
        %v1503 = vpop.permute.xlu0 %1502
        %v1505 = vmul.f32 %v1503, %v1499
        %v1506 = vmul.f32 %v1503, %v1500
        %v1507 = vadd.f32 %v1487, %v1505
        %v1508 = vadd.f32 %v1488, %v1506
        %1509 = vset.pattern.permute.xlu0 12
        %1510 = vperm.xlu0 %1509, %v1259
        %v1511 = vpop.permute.xlu0 %1510
        %v1513 = vmul.f32 %v1511, %v1272
        %v1514 = vmul.f32 %v1511, %v1268
        %v1515 = vmul.f32 %v1511, %v1273
        %1519 = vrot.lane.b32.xlu0 %v1513, 94
        %v1520 = vpop.permute.xlu0 %1519
        %1521 = vrot.lane.b32.xlu0 %v1514, 94
        %v1522 = vpop.permute.xlu0 %1521
        %1523 = vrot.lane.b32.xlu0 %v1515, 94
        %v1524 = vpop.permute.xlu0 %1523
        %v1525 = vsel %vm883, %v1520, %v1522
        %v1526 = vsel %vm883, %v1522, %v1524
        %v1529 = vadd.f32 %v1507, %v1525
        %v1530 = vadd.f32 %v1508, %v1526
        %1531 = vrot.lane.b32.xlu0 %v1272, 93
        %v1532 = vpop.permute.xlu0 %1531
        %1533 = vrot.lane.b32.xlu0 %v1268, 93
        %v1534 = vpop.permute.xlu0 %1533
        %1535 = vrot.lane.b32.xlu0 %v1273, 93
        %v1536 = vpop.permute.xlu0 %1535
        %v1537 = vsel %vm896, %v1532, %v1534
        %v1538 = vsel %vm896, %v1534, %v1536
        %v1541 = vsel %vm611, %v1537, 0.0
        %v1542 = vsel %vm612, %v1538, 0.0
        %1543 = vset.pattern.permute.xlu0 13
        %1544 = vperm.xlu0 %1543, %v1259
        %v1545 = vpop.permute.xlu0 %1544
        %v1547 = vmul.f32 %v1545, %v1541
        %v1548 = vmul.f32 %v1545, %v1542
        %v1549 = vadd.f32 %v1529, %v1547
        %v1550 = vadd.f32 %v1530, %v1548
        %1551 = vrot.lane.b32.xlu0 %v1272, 92
        %v1552 = vpop.permute.xlu0 %1551
        %1553 = vrot.lane.b32.xlu0 %v1268, 92
        %v1554 = vpop.permute.xlu0 %1553
        %1555 = vrot.lane.b32.xlu0 %v1273, 92
        %v1556 = vpop.permute.xlu0 %1555
        %v1557 = vsel %vm917, %v1552, %v1554
        %v1558 = vsel %vm917, %v1554, %v1556
        %v1561 = vsel %vm619, %v1557, 0.0
        %v1562 = vsel %vm620, %v1558, 0.0
        %1563 = vset.pattern.permute.xlu0 14
        %1564 = vperm.xlu0 %1563, %v1259
        %v1565 = vpop.permute.xlu0 %1564
        %v1567 = vmul.f32 %v1565, %v1561
        %v1568 = vmul.f32 %v1565, %v1562
        %v1569 = vadd.f32 %v1549, %v1567
        %v1570 = vadd.f32 %v1550, %v1568
        %1571 = vrot.lane.b32.xlu0 %v1272, 80
        %v1572 = vpop.permute.xlu0 %1571
        %1573 = vrot.lane.b32.xlu0 %v1268, 80
        %v1574 = vpop.permute.xlu0 %1573
        %1575 = vrot.lane.b32.xlu0 %v1273, 80
        %v1576 = vpop.permute.xlu0 %1575
        %v1577 = vsel %vm938, %v1572, %v1574
        %v1578 = vsel %vm938, %v1574, %v1576
        %v1581 = vsel %vm595, %v1577, 0.0
        %v1582 = vsel %vm596, %v1578, 0.0
        %1583 = vset.pattern.permute.xlu0 15
        %1584 = vperm.xlu0 %1583, %v1259
        %v1585 = vpop.permute.xlu0 %1584
        %v1587 = vmul.f32 %v1585, %v1581
        %v1588 = vmul.f32 %v1585, %v1582
        %v1589 = vadd.f32 %v1569, %v1587
        %v1590 = vadd.f32 %v1570, %v1588
        %1591 = vrot.lane.b32.xlu0 %v1272, 79
        %v1592 = vpop.permute.xlu0 %1591
        %1593 = vrot.lane.b32.xlu0 %v1268, 79
        %v1594 = vpop.permute.xlu0 %1593
        %1595 = vrot.lane.b32.xlu0 %v1273, 79
        %v1596 = vpop.permute.xlu0 %1595
        %v1597 = vsel %vm959, %v1592, %v1594
        %v1598 = vsel %vm959, %v1594, %v1596
        %v1601 = vsel %vm603, %v1597, 0.0
        %v1602 = vsel %vm604, %v1598, 0.0
        %1603 = vset.pattern.permute.xlu0 16
        %1604 = vperm.xlu0 %1603, %v1259
        %v1605 = vpop.permute.xlu0 %1604
        %v1607 = vmul.f32 %v1605, %v1601
        %v1608 = vmul.f32 %v1605, %v1602
        %v1609 = vadd.f32 %v1589, %v1607
        %v1610 = vadd.f32 %v1590, %v1608
        %1611 = vset.pattern.permute.xlu0 17
        %1612 = vperm.xlu0 %1611, %v1259
        %v1613 = vpop.permute.xlu0 %1612
        %v1615 = vmul.f32 %v1613, %v1272
        %v1616 = vmul.f32 %v1613, %v1268
        %v1617 = vmul.f32 %v1613, %v1273
        %1621 = vrot.lane.b32.xlu0 %v1615, 78
        %v1622 = vpop.permute.xlu0 %1621
        %1623 = vrot.lane.b32.xlu0 %v1616, 78
        %v1624 = vpop.permute.xlu0 %1623
        %1625 = vrot.lane.b32.xlu0 %v1617, 78
        %v1626 = vpop.permute.xlu0 %1625
        %v1627 = vsel %vm990, %v1622, %v1624
        %v1628 = vsel %vm990, %v1624, %v1626
        %v1631 = vadd.f32 %v1609, %v1627
        %v1632 = vadd.f32 %v1610, %v1628
        %1633 = vrot.lane.b32.xlu0 %v1272, 77
        %v1634 = vpop.permute.xlu0 %1633
        %1635 = vrot.lane.b32.xlu0 %v1268, 77
        %v1636 = vpop.permute.xlu0 %1635
        %1637 = vrot.lane.b32.xlu0 %v1273, 77
        %v1638 = vpop.permute.xlu0 %1637
        %v1639 = vsel %vm1003, %v1634, %v1636
        %v1640 = vsel %vm1003, %v1636, %v1638
        %v1643 = vsel %vm611, %v1639, 0.0
        %v1644 = vsel %vm612, %v1640, 0.0
        %1645 = vset.pattern.permute.xlu0 18
        %1646 = vperm.xlu0 %1645, %v1259
        %v1647 = vpop.permute.xlu0 %1646
        %v1649 = vmul.f32 %v1647, %v1643
        %v1650 = vmul.f32 %v1647, %v1644
        %v1651 = vadd.f32 %v1631, %v1649
        %v1652 = vadd.f32 %v1632, %v1650
        %1653 = vrot.lane.b32.xlu0 %v1272, 76
        %v1654 = vpop.permute.xlu0 %1653
        %1655 = vrot.lane.b32.xlu0 %v1268, 76
        %v1656 = vpop.permute.xlu0 %1655
        %1657 = vrot.lane.b32.xlu0 %v1273, 76
        %v1658 = vpop.permute.xlu0 %1657
        %v1659 = vsel %vm1024, %v1654, %v1656
        %v1660 = vsel %vm1024, %v1656, %v1658
        %v1663 = vsel %vm619, %v1659, 0.0
        %v1664 = vsel %vm620, %v1660, 0.0
        %1665 = vset.pattern.permute.xlu0 19
        %1666 = vperm.xlu0 %1665, %v1259
        %v1667 = vpop.permute.xlu0 %1666
        %v1669 = vmul.f32 %v1667, %v1663
        %v1670 = vmul.f32 %v1667, %v1664
        %v1671 = vadd.f32 %v1651, %v1669
        %v1672 = vadd.f32 %v1652, %v1670
        %1673 = vrot.lane.b32.xlu0 %v1272, 64
        %v1674 = vpop.permute.xlu0 %1673
        %1675 = vrot.lane.b32.xlu0 %v1268, 64
        %v1676 = vpop.permute.xlu0 %1675
        %1677 = vrot.lane.b32.xlu0 %v1273, 64
        %v1678 = vpop.permute.xlu0 %1677
        %v1679 = vsel %vm1045, %v1674, %v1676
        %v1680 = vsel %vm1045, %v1676, %v1678
        %v1683 = vsel %vm595, %v1679, 0.0
        %v1684 = vsel %vm596, %v1680, 0.0
        %1685 = vset.pattern.permute.xlu0 20
        %1686 = vperm.xlu0 %1685, %v1259
        %v1687 = vpop.permute.xlu0 %1686
        %v1689 = vmul.f32 %v1687, %v1683
        %v1690 = vmul.f32 %v1687, %v1684
        %v1691 = vadd.f32 %v1671, %v1689
        %v1692 = vadd.f32 %v1672, %v1690
        %1693 = vrot.lane.b32.xlu0 %v1272, 63
        %v1694 = vpop.permute.xlu0 %1693
        %1695 = vrot.lane.b32.xlu0 %v1268, 63
        %v1696 = vpop.permute.xlu0 %1695
        %1697 = vrot.lane.b32.xlu0 %v1273, 63
        %v1698 = vpop.permute.xlu0 %1697
        %v1699 = vsel %vm1066, %v1694, %v1696
        %v1700 = vsel %vm1066, %v1696, %v1698
        %v1703 = vsel %vm603, %v1699, 0.0
        %v1704 = vsel %vm604, %v1700, 0.0
        %1705 = vset.pattern.permute.xlu0 21
        %1706 = vperm.xlu0 %1705, %v1259
        %v1707 = vpop.permute.xlu0 %1706
        %v1709 = vmul.f32 %v1707, %v1703
        %v1710 = vmul.f32 %v1707, %v1704
        %v1711 = vadd.f32 %v1691, %v1709
        %v1712 = vadd.f32 %v1692, %v1710
        %1713 = vset.pattern.permute.xlu0 22
        %1714 = vperm.xlu0 %1713, %v1259
        %v1715 = vpop.permute.xlu0 %1714
        %v1717 = vmul.f32 %v1715, %v1272
        %v1718 = vmul.f32 %v1715, %v1268
        %v1719 = vmul.f32 %v1715, %v1273
        %1723 = vrot.lane.b32.xlu0 %v1717, 62
        %v1724 = vpop.permute.xlu0 %1723
        %1725 = vrot.lane.b32.xlu0 %v1718, 62
        %v1726 = vpop.permute.xlu0 %1725
        %1727 = vrot.lane.b32.xlu0 %v1719, 62
        %v1728 = vpop.permute.xlu0 %1727
        %v1729 = vsel %vm1097, %v1724, %v1726
        %v1730 = vsel %vm1097, %v1726, %v1728
        %v1733 = vadd.f32 %v1711, %v1729
        %v1734 = vadd.f32 %v1712, %v1730
        %1735 = vrot.lane.b32.xlu0 %v1272, 61
        %v1736 = vpop.permute.xlu0 %1735
        %1737 = vrot.lane.b32.xlu0 %v1268, 61
        %v1738 = vpop.permute.xlu0 %1737
        %1739 = vrot.lane.b32.xlu0 %v1273, 61
        %v1740 = vpop.permute.xlu0 %1739
        %v1741 = vsel %vm1110, %v1736, %v1738
        %v1742 = vsel %vm1110, %v1738, %v1740
        %v1745 = vsel %vm611, %v1741, 0.0
        %v1746 = vsel %vm612, %v1742, 0.0
        %1747 = vset.pattern.permute.xlu0 23
        %1748 = vperm.xlu0 %1747, %v1259
        %v1749 = vpop.permute.xlu0 %1748
        %v1751 = vmul.f32 %v1749, %v1745
        %v1752 = vmul.f32 %v1749, %v1746
        %v1753 = vadd.f32 %v1733, %v1751
        %v1754 = vadd.f32 %v1734, %v1752
        %1755 = vrot.lane.b32.xlu0 %v1272, 60
        %v1756 = vpop.permute.xlu0 %1755
        %1757 = vrot.lane.b32.xlu0 %v1268, 60
        %v1758 = vpop.permute.xlu0 %1757
        %1759 = vrot.lane.b32.xlu0 %v1273, 60
        %v1760 = vpop.permute.xlu0 %1759
        %v1761 = vsel %vm1131, %v1756, %v1758
        %v1762 = vsel %vm1131, %v1758, %v1760
        %v1765 = vsel %vm619, %v1761, 0.0
        %v1766 = vsel %vm620, %v1762, 0.0
        %1767 = vset.pattern.permute.xlu0 24
        %1768 = vperm.xlu0 %1767, %v1259
        %v1769 = vpop.permute.xlu0 %1768
        %v1771 = vmul.f32 %v1769, %v1765
        %v1772 = vmul.f32 %v1769, %v1766
        %v1773 = vadd.f32 %v1753, %v1771
        %v1774 = vadd.f32 %v1754, %v1772
        %1776 = vset.pattern.permute.xlu0 0
        %1777 = vperm.xlu0 %1776, %v1260
        %v1778 = vpop.permute.xlu0 %1777
        %v1780 = vmul.f32 %v1773, %v1778
        %v1781 = vmul.f32 %v1774, %v1778
        %1783 = vset.pattern.permute.xlu0 0
        %1784 = vperm.xlu0 %1783, %v1261
        %v1785 = vpop.permute.xlu0 %1784
        %v1787 = vadd.f32 %v1780, %v1785
        %v1788 = vadd.f32 %v1781, %v1785
        %v1791 = vrot.slane %v1787, 4
        %v1792 = vrot.slane %v1788, 4
        %v1795 = vsel %vm462, %v1257, %v1791
        %v1796 = vsel %vm462, %v1258, %v1792
        %v1797 = vadd.f32 %v1795, %v453
        %v1798 = vadd.f32 %v1796, %v454
        %1799 = vst [vmem:[%s446] sm:$0xff] %v1797
        %1800 = vst [vmem:[%s446 + $0x8] sm:$0xff] %v1798
        %s1801 = sand.u32 %s314, 1
        %s1802 = scalar_lea.sflag [#allocation4], %s1801
        %s1803 = sand.u32 %s314, 1
        %s1804 = smul.addr %s1803, 16
        %s1805 = scalar_lea.vmem [#allocation5], %s1804
        // Predicated region
        $region77: #{tpu_custom_call.1} parent=71 // pred_check
          %p1806 = pneg %p324
        $region78: #{tpu_custom_call.1} parent=71 // pred_check_branch
          %1808 = sbr.rel (%p1806) target = $region80
        $region79: #{tpu_custom_call.1} parent=71 // pred_region
          %s1810 = ssub.s32 256, 256
          %1811 = vsyncadd %s1802, %s1810
          %s1812 = smul.addr %s28, 2
          %s1813 = smul.addr %s1812, 128
          %s1814 = scalar_lea.hbm %s13, %s1813
          %s1816 = sshll.u32 %s1805, 4
          %s1817 = int_to_ptr.vmem [resolvable:$true] %s1816
          %1819 = dma.vmem_to_hbm [thread:$0]  %s1817, 256, %s1814, %s1802
        $region80: #{tpu_custom_call.1} parent=71 // pred_fallthru
          _
      $region72: #{tpu_custom_call.1} parent=5 // pred_fallthru
        _
      %p1820 = scmp.le.s32.totalorder 2, %s23
      // Predicated region
      $region81: #{tpu_custom_call.1} parent=5 // pred_check
        %p1821 = pneg %p1820
      $region82: #{tpu_custom_call.1} parent=5 // pred_check_branch
        %1823 = sbr.rel (%p1821) target = $region84
      $region83: #{tpu_custom_call.1} parent=5 // pred_region
        %s1824 = ssub.s32 %s23, 2
        // Predicated region
        $region85: #{tpu_custom_call.1} parent=83 // pred_check
          %p1825 = pneg %p330
        $region86: #{tpu_custom_call.1} parent=83 // pred_check_branch
          %1827 = sbr.rel (%p1825) target = $region88
        $region87: #{tpu_custom_call.1} parent=83 // pred_region
          %s1828 = sand.u32 %s315, 1
          %s1829 = scalar_lea.sflag [#allocation4], %s1828
          %s1830 = sand.u32 %s315, 1
          %s1831 = smul.addr %s1830, 16
          %s1832 = scalar_lea.vmem [#allocation5], %s1831
          %1833 = dma.done %s1829, 256
        $region88: #{tpu_custom_call.1} parent=83 // pred_fallthru
          _
      $region84: #{tpu_custom_call.1} parent=5 // pred_fallthru
        _
    $region6: #{tpu_custom_call.1} parent=1 // loop_footer
      %s27 = sadd.s32 1, %s23
    $region7: #{tpu_custom_call.1} parent=1 // loop_footer_branch
      %22 = sbr.rel target = $region3
    $region8: #{tpu_custom_call.1} parent=1 // loop_exit
      _
    %1834 = vsyncpa [#allocation3], 1
    %s1835 = scalar_lea.sflag [#allocation3], 1
    %1836 = vsyncpa %s1835, 1
    %1837 = vsyncpa [#allocation4], 1
    %s1838 = scalar_lea.sflag [#allocation4], 1
    %1839 = vsyncpa %s1838, 1

</llo_original>
